<compile_context>
chip_gen: v7x
topology: tpu7x:2x2x1
jax: 0.10.0
libtpu: 0.0.40
codegen_flags: <defaults>
</compile_context>

<pallas_src>
import math

import jax
import jax.numpy as jnp
from jax.experimental import pallas as pl
from jax.experimental.pallas import tpu as pltpu


def _round_up(x, m):
    return ((x + m - 1) // m) * m


def _choose_tm(b):
    """Batch tile size (rows per grid step)."""
    if b <= 256:
        # Single tile for small batches; keep a sublane-friendly multiple of 8.
        return max(8, _round_up(b, 8))
    # Target 512 rows/step to amortize the ~0.35us per-grid-step overhead
    # (v6e/v7x), but cap at ~half the batch (rounded up to 256) so the grid
    # keeps >= 2 steps and the "parallel" axis can use both v7x TensorCores.
    # 256/512 are multiples of 128, matching the v5e MXU tile as well.
    return min(512, _round_up((b + 1) // 2, 256))


def _discriminator_kernel(x_ref, w1_ref, b1_ref, w2_ref, b2_ref,
                          w3_ref, b3_ref, out_ref):
    # x_ref:  (TM, D)   f32 (cast to bf16 in-kernel)
    # w1:     (D, 512)  bf16    b1: (1, 512) f32
    # w2:     (512,256) bf16    b2: (1, 256) f32
    # w3:     (1, 256)  f32 (row)   b3: (1, 1) f32
    # out_ref:(1, 1, TM) f32 (lane-dense row of sigmoid outputs)
    x = x_ref[...].astype(jnp.bfloat16)   # in-kernel cast: VPU op hidden under MXU

    # Layer 1: Linear(D, 512) + LeakyReLU(0.2)  (bf16 MXU, f32 accumulate)
    h1 = jnp.dot(x, w1_ref[...], preferred_element_type=jnp.float32) + b1_ref[...]
    h1 = jnp.maximum(h1, 0.2 * h1)

    # Layer 2: Linear(512, 256) + LeakyReLU(0.2)
    h2 = jnp.dot(h1.astype(jnp.bfloat16), w2_ref[...],
                 preferred_element_type=jnp.float32) + b2_ref[...]
    h2 = jnp.maximum(h2, 0.2 * h2)

    # Layer 3: Linear(256, 1) + Sigmoid.
    # N=1 matmul would use 1/256 of the MXU width -> VPU multiply + cross-lane
    # (XLU) reduction instead.
    logits = jnp.sum(h2 * w3_ref[...], axis=-1, keepdims=True) + b3_ref[...]  # (TM,1)

    # Lane-dense store: transpose the (TM,1) column to a (1,TM) row (cheap XLU
    # move; XLU has slack) so the output DMA is dense, unmasked stores.
    out_ref[0] = jnp.transpose(jax.nn.sigmoid(logits)).astype(out_ref.dtype)


def discriminator_forward(img, params):
    """img: (B, C, H, W) float32 -> validity: (B, 1) float32."""
    b = img.shape[0]
    x = img.reshape(b, -1).astype(jnp.float32)  # same as torch img.view(B, -1)
    d = x.shape[1]
    w1, b1, w2, b2, w3_row, b3 = params

    # Weights: one-time bf16 cast (tiny vs. x); halves their VMEM/HBM footprint.
    w1_bf16 = w1.astype(jnp.bfloat16)
    w2_bf16 = w2.astype(jnp.bfloat16)

    tm = _choose_tm(b)
    num_tiles = pl.cdiv(b, tm)      # no jnp.pad: partial trailing block is fine,
    grid = (num_tiles,)             # its rows are sliced off below.

    # Weights/biases: constant index_maps -> VMEM-resident, fetched once;
    # Buffered(1) drops the needless second pipeline buffer for them.
    in_specs = [
        pl.BlockSpec((tm, d), lambda i: (i, 0)),                    # x (f32), pipelined over B
        pl.BlockSpec((d, 512), lambda i: (0, 0),
                     pipeline_mode=pl.Buffered(1)),                 # W1
        pl.BlockSpec((1, 512), lambda i: (0, 0),
                     pipeline_mode=pl.Buffered(1)),                 # b1
        pl.BlockSpec((512, 256), lambda i: (0, 0),
                     pipeline_mode=pl.Buffered(1)),                 # W2
        pl.BlockSpec((1, 256), lambda i: (0, 0),
                     pipeline_mode=pl.Buffered(1)),                 # b2
        pl.BlockSpec((1, 256), lambda i: (0, 0),
                     pipeline_mode=pl.Buffered(1)),                 # W3 row
        pl.BlockSpec((1, 1), lambda i: (0, 0),
                     pipeline_mode=pl.Buffered(1)),                 # b3
    ]
    out_spec = pl.BlockSpec((1, 1, tm), lambda i: (i, 0, 0))        # lane-dense rows

    # Explicit VMEM budget (v7x has only 64 MiB physical / 32 MiB default scoped).
    vmem_bytes = (
        2 * tm * d * 4            # x f32 tile, double-buffered
        + tm * d * 2              # in-kernel bf16 copy of x
        + d * 512 * 2             # W1 bf16 (single buffer)
        + 512 * 256 * 2           # W2 bf16
        + (512 + 256 + 256 + 1) * 4   # biases + W3 row
        + tm * 512 * 4 + tm * 256 * 4  # h1 / h2 f32 intermediates
        + 2 * tm * 4              # output row, double-buffered
    )
    vmem_limit = int(min(max(2 * vmem_bytes, 16 * 1024 * 1024), 56 * 1024 * 1024))

    flops = 2 * b * (d * 512 + 512 * 256 + 256)
    bytes_accessed = (
        x.size * 4 + w1_bf16.size * 2 + w2_bf16.size * 2
        + (b1.size + b2.size + w3_row.size + b3.size) * 4
        + num_tiles * tm * 4
    )
    cost = pl.CostEstimate(flops=flops, transcendentals=b,
                           bytes_accessed=bytes_accessed)

    out_rows = pl.pallas_call(
        _discriminator_kernel,
        out_shape=jax.ShapeDtypeStruct((num_tiles, 1, tm), jnp.float32),
        grid=grid,
        in_specs=in_specs,
        out_specs=out_spec,
        compiler_params=pltpu.CompilerParams(
            dimension_semantics=("parallel",),   # megacore sharding on v7x
            vmem_limit_bytes=vmem_limit,
        ),
        cost_estimate=cost,
    )(x, w1_bf16, b1, w2_bf16, b2, w3_row, b3)

    # (num_tiles, 1, TM) -> (B, 1); rows beyond B (partial last tile) discarded.
    return out_rows.reshape(num_tiles * tm)[:b].reshape(b, 1)


def init_discriminator_params(key, in_features):
    """torch.nn.Linear default init: U(-1/sqrt(fan_in), 1/sqrt(fan_in)).
    W1/W2 stored as (in, out); W3 stored as a (1, 256) row (for VPU reduce)."""
    params = []
    # Layer 1 / 2: (in, out) weights
    for fan_in, fan_out in [(in_features, 512), (512, 256)]:
        key, kw, kb = jax.random.split(key, 3)
        bound = 1.0 / math.sqrt(fan_in)
        w = jax.random.uniform(kw, (fan_in, fan_out), jnp.float32, -bound, bound)
        bias = jax.random.uniform(kb, (1, fan_out), jnp.float32, -bound, bound)
        params += [w, bias]
    # Layer 3: weight row (1, 256), bias (1, 1)
    key, kw, kb = jax.random.split(key, 3)
    bound = 1.0 / math.sqrt(256)
    w3_row = jax.random.uniform(kw, (1, 256), jnp.float32, -bound, bound)
    b3 = jax.random.uniform(kb, (1, 1), jnp.float32, -bound, bound)
    params += [w3_row, b3]
    return tuple(params)


def _reference_forward(img, params):
    """Pure-JAX f32 reference (matches the PyTorch module)."""
    b = img.shape[0]
    x = img.reshape(b, -1).astype(jnp.float32)
    w1, b1, w2, b2, w3_row, b3 = params
    h1 = x @ w1 + b1
    h1 = jnp.where(h1 >= 0.0, h1, 0.2 * h1)
    h2 = h1 @ w2 + b2
    h2 = jnp.where(h2 >= 0.0, h2, 0.2 * h2)
    logits = h2 @ w3_row.T + b3
    return jax.nn.sigmoid(logits)


if __name__ == "__main__":
    key = jax.random.PRNGKey(0)
    k_img, k_params = jax.random.split(key)

    # Small image shape consistent with the module: img_shape = (C, H, W)
    B, C, H, W = 2, 4, 16, 16
    img = jax.random.normal(k_img, (B, C, H, W), dtype=jnp.float32)

    params = init_discriminator_params(k_params, C * H * W)

    validity = discriminator_forward(img, params)
    validity = jax.block_until_ready(validity)

    assert validity.shape == (B, 1)
    assert bool(jnp.all((validity >= 0.0) & (validity <= 1.0)))

    # Sanity-check against the f32 reference (loose tol: bf16 matmul operands).
    ref = _reference_forward(img, params)
    assert bool(jnp.max(jnp.abs(validity - ref)) < 5e-2)

    print("KERNEL_OK")
</pallas_src>

<mosaic_0001>
module attributes {stable_mosaic.version = 11 : i64} {
  func.func @_discriminator_kernel(%arg0: i32, %arg1: memref<8x1024xf32, #tpu.memory_space<vmem>>, %arg2: memref<1024x512xbf16, #tpu.memory_space<vmem>>, %arg3: memref<1x512xf32, #tpu.memory_space<vmem>>, %arg4: memref<512x256xbf16, #tpu.memory_space<vmem>>, %arg5: memref<1x256xf32, #tpu.memory_space<vmem>>, %arg6: memref<1x256xf32, #tpu.memory_space<vmem>>, %arg7: memref<1x1xf32, #tpu.memory_space<vmem>>, %arg8: memref<1x1x8xf32, #tpu.memory_space<vmem>>) attributes {dimension_semantics = [#tpu.dimension_semantics<parallel>], iteration_bounds = array<i64: 1>, scalar_prefetch = 0 : i64, scratch_operands = 0 : i64, tpu.core_type = #tpu.core_type<tc>, window_params = [{transform_indices = @transform_0, window_bounds = array<i64: 8, 1024>}, {pipeline_mode = #tpu.pipeline_mode<synchronous>, transform_indices = @transform_1, window_bounds = array<i64: 1024, 512>}, {pipeline_mode = #tpu.pipeline_mode<synchronous>, transform_indices = @transform_2, window_bounds = array<i64: 1, 512>}, {pipeline_mode = #tpu.pipeline_mode<synchronous>, transform_indices = @transform_3, window_bounds = array<i64: 512, 256>}, {pipeline_mode = #tpu.pipeline_mode<synchronous>, transform_indices = @transform_4, window_bounds = array<i64: 1, 256>}, {pipeline_mode = #tpu.pipeline_mode<synchronous>, transform_indices = @transform_5, window_bounds = array<i64: 1, 256>}, {pipeline_mode = #tpu.pipeline_mode<synchronous>, transform_indices = @transform_6, window_bounds = array<i64: 1, 1>}, {transform_indices = @transform_7, window_bounds = array<i64: 1, 1, 8>}]} {
    %c0 = arith.constant 0 : index
    %c0_0 = arith.constant 0 : index
    %0 = vector.load %arg1[%c0, %c0_0] : memref<8x1024xf32, #tpu.memory_space<vmem>>, vector<8x1024xf32>
    %1 = arith.truncf %0 : vector<8x1024xf32> to vector<8x1024xbf16>
    %c0_1 = arith.constant 0 : index
    %c0_2 = arith.constant 0 : index
    %2 = vector.load %arg2[%c0_1, %c0_2] : memref<1024x512xbf16, #tpu.memory_space<vmem>>, vector<1024x512xbf16>
    %cst = arith.constant dense<0.000000e+00> : vector<8x512xf32>
    %3 = tpu.matmul %1, %2, %cst {dimension_numbers = #tpu.dot_dimension_numbers<[1], [0], [0], [1], [0, 0, 1, 1], [], []>} : vector<8x1024xbf16>, vector<1024x512xbf16>, vector<8x512xf32> -> vector<8x512xf32>
    %c0_3 = arith.constant 0 : index
    %c0_4 = arith.constant 0 : index
    %4 = vector.load %arg3[%c0_3, %c0_4] : memref<1x512xf32, #tpu.memory_space<vmem>>, vector<1x512xf32>
    %5 = vector.broadcast %4 : vector<1x512xf32> to vector<8x512xf32>
    %6 = arith.addf %3, %5 : vector<8x512xf32>
    %cst_5 = arith.constant 2.000000e-01 : f32
    %7 = vector.broadcast %cst_5 : f32 to vector<8x512xf32>
    %8 = arith.mulf %7, %6 : vector<8x512xf32>
    %9 = arith.maximumf %6, %8 : vector<8x512xf32>
    %10 = arith.truncf %9 : vector<8x512xf32> to vector<8x512xbf16>
    %c0_6 = arith.constant 0 : index
    %c0_7 = arith.constant 0 : index
    %11 = vector.load %arg4[%c0_6, %c0_7] : memref<512x256xbf16, #tpu.memory_space<vmem>>, vector<512x256xbf16>
    %cst_8 = arith.constant dense<0.000000e+00> : vector<8x256xf32>
    %12 = tpu.matmul %10, %11, %cst_8 {dimension_numbers = #tpu.dot_dimension_numbers<[1], [0], [0], [1], [0, 0, 1, 1], [], []>} : vector<8x512xbf16>, vector<512x256xbf16>, vector<8x256xf32> -> vector<8x256xf32>
    %c0_9 = arith.constant 0 : index
    %c0_10 = arith.constant 0 : index
    %13 = vector.load %arg5[%c0_9, %c0_10] : memref<1x256xf32, #tpu.memory_space<vmem>>, vector<1x256xf32>
    %14 = vector.broadcast %13 : vector<1x256xf32> to vector<8x256xf32>
    %15 = arith.addf %12, %14 : vector<8x256xf32>
    %cst_11 = arith.constant 2.000000e-01 : f32
    %16 = vector.broadcast %cst_11 : f32 to vector<8x256xf32>
    %17 = arith.mulf %16, %15 : vector<8x256xf32>
    %18 = arith.maximumf %15, %17 : vector<8x256xf32>
    %c0_12 = arith.constant 0 : index
    %c0_13 = arith.constant 0 : index
    %19 = vector.load %arg6[%c0_12, %c0_13] : memref<1x256xf32, #tpu.memory_space<vmem>>, vector<1x256xf32>
    %20 = vector.broadcast %19 : vector<1x256xf32> to vector<8x256xf32>
    %21 = arith.mulf %18, %20 : vector<8x256xf32>
    %cst_14 = arith.constant dense<0.000000e+00> : vector<8xf32>
    %22 = vector.multi_reduction <add>, %21, %cst_14 [1] : vector<8x256xf32> to vector<8xf32>
    %23 = vector.shape_cast %22 : vector<8xf32> to vector<8x1xf32>
    %c0_15 = arith.constant 0 : index
    %c0_16 = arith.constant 0 : index
    %24 = vector.load %arg7[%c0_15, %c0_16] : memref<1x1xf32, #tpu.memory_space<vmem>>, vector<1x1xf32>
    %25 = vector.broadcast %24 : vector<1x1xf32> to vector<8x1xf32>
    %26 = arith.addf %23, %25 : vector<8x1xf32>
    %27 = arith.negf %26 : vector<8x1xf32>
    %28 = math.exp %27 : vector<8x1xf32>
    %cst_17 = arith.constant 1.000000e+00 : f32
    %29 = vector.broadcast %cst_17 : f32 to vector<8x1xf32>
    %30 = arith.addf %29, %28 : vector<8x1xf32>
    %31 = arith.divf %29, %30 : vector<8x1xf32>
    %32 = tpu.transpose %31, [1, 0] : vector<8x1xf32> -> vector<1x8xf32>
    %c0_18 = arith.constant 0 : index
    %c0_19 = arith.constant 0 : index
    %c0_20 = arith.constant 0 : index
    %33 = vector.load %arg8[%c0_18, %c0_19, %c0_20] : memref<1x1x8xf32, #tpu.memory_space<vmem>>, vector<1x1x8xf32>
    %34 = vector.shape_cast %33 : vector<1x1x8xf32> to vector<1x8xf32>
    %35 = vector.shape_cast %32 : vector<1x8xf32> to vector<1x1x8xf32>
    tpu.vector_store %arg8[%c0_18, %c0_19, %c0_20], %35 {strides = array<i32>} : memref<1x1x8xf32, #tpu.memory_space<vmem>>, vector<1x1x8xf32>,
    return
  }
  func.func @transform_0(%arg0: i32) -> (i32, i32) {
    %c0_i32 = arith.constant 0 : i32
    %c0_i32_0 = arith.constant 0 : i32
    return %arg0, %c0_i32 : i32, i32
  }
  func.func @transform_1(%arg0: i32) -> (i32, i32) {
    %c0_i32 = arith.constant 0 : i32
    %c0_i32_0 = arith.constant 0 : i32
    %c0_i32_1 = arith.constant 0 : i32
    return %c0_i32, %c0_i32_0 : i32, i32
  }
  func.func @transform_2(%arg0: i32) -> (i32, i32) {
    %c0_i32 = arith.constant 0 : i32
    %c0_i32_0 = arith.constant 0 : i32
    %c0_i32_1 = arith.constant 0 : i32
    return %c0_i32, %c0_i32_0 : i32, i32
  }
  func.func @transform_3(%arg0: i32) -> (i32, i32) {
    %c0_i32 = arith.constant 0 : i32
    %c0_i32_0 = arith.constant 0 : i32
    %c0_i32_1 = arith.constant 0 : i32
    return %c0_i32, %c0_i32_0 : i32, i32
  }
  func.func @transform_4(%arg0: i32) -> (i32, i32) {
    %c0_i32 = arith.constant 0 : i32
    %c0_i32_0 = arith.constant 0 : i32
    %c0_i32_1 = arith.constant 0 : i32
    return %c0_i32, %c0_i32_0 : i32, i32
  }
  func.func @transform_5(%arg0: i32) -> (i32, i32) {
    %c0_i32 = arith.constant 0 : i32
    %c0_i32_0 = arith.constant 0 : i32
    %c0_i32_1 = arith.constant 0 : i32
    return %c0_i32, %c0_i32_0 : i32, i32
  }
  func.func @transform_6(%arg0: i32) -> (i32, i32) {
    %c0_i32 = arith.constant 0 : i32
    %c0_i32_0 = arith.constant 0 : i32
    %c0_i32_1 = arith.constant 0 : i32
    return %c0_i32, %c0_i32_0 : i32, i32
  }
  func.func @transform_7(%arg0: i32) -> (i32, i32, i32) {
    %c0_i32 = arith.constant 0 : i32
    %c0_i32_0 = arith.constant 0 : i32
    %c0_i32_1 = arith.constant 0 : i32
    return %arg0, %c0_i32, %c0_i32_0 : i32, i32, i32
  }
}

</mosaic_0001>

<llo_original>
// kernel: tpu_custom_call.1
$region0: #{tpu_custom_call.1}
  #allocation0 [shape = 'u32[]', space=smem, size = 0x4, offset = 0x4, fixed_abs, tag = 'smem constant byte address 0x4 - core index']
  #allocation1 [shape = 'u32[144,128]{1,0:T(1,128)}', space=vmem, size = 0x12000, scoped, tag = 'internal scratch']
  #allocation2 [shape = 'f32[1,1]{1,0:T(1,128)S(1)}', space=vmem, size = 0x200, scoped, tag = 'scoped memory for tpu_custom_call.1']
  %s0 = inlined_call_operand.hbm [shape: f32[2,1024], index: 0, kind: input, shape index: {}]
  %s1 = inlined_call_operand.hbm [shape: bf16[1024,512], index: 1, kind: input, shape index: {}]
  %s2 = inlined_call_operand.vmem [shape: f32[1,512], index: 2, kind: input, shape index: {}]
  %s3 = inlined_call_operand.hbm [shape: bf16[512,256], index: 3, kind: input, shape index: {}]
  %s4 = inlined_call_operand.vmem [shape: f32[1,256], index: 4, kind: input, shape index: {}]
  %s5 = inlined_call_operand.vmem [shape: f32[1,256], index: 5, kind: input, shape index: {}]
  %s6 = inlined_call_operand.<no memory space> [shape: f32[1,1], index: 6, kind: input, shape index: {}]
  %s7 = inlined_call_operand.hbm [shape: f32[1,1,8], index: 7, kind: output, shape index: {}]
  %s8 = sld [smem:[#allocation0]]
  $region50: #{tpu_custom_call.1} parent=0
    _
  %s10 = ssub.s32 1, %s8
  %s11 = scalar_select 0, %s10, %s8
  %v12 = vstv %s6
  %13 = vst [vmem:[#allocation2] sm:$0x1] %v12
  $region1: #{tpu_custom_call.1} parent=0
    #allocation3 [shape = 'u8[32768]{0}', space=vmem, size = 0x8000, scoped, tag = 'input window, operand 0, single buffered']
    #allocation4 [shape = 's32[1]{0}', space=sflag, size = 0x4, scoped, tag = 'scoped memory for tpu_custom_call.1']
    #allocation5 [shape = 's32[1]{0}', space=sflag, size = 0x4, scoped, tag = 'scoped memory for tpu_custom_call.1']
    #allocation6 [shape = 'u8[1048576]{0}', space=vmem, size = 0x100000, scoped, tag = 'input window, operand 1, single buffered']
    #allocation7 [shape = 's32[1]{0}', space=sflag, size = 0x4, scoped, tag = 'scoped memory for tpu_custom_call.1']
    #allocation8 [shape = 'u8[262144]{0}', space=vmem, size = 0x40000, scoped, tag = 'input window, operand 3, single buffered']
    #allocation9 [shape = 'u8[512]{0}', space=vmem, size = 0x400, scoped, tag = 'output window, operand 0, single buffered']
    %14 = vsyncpa [#allocation4], 0
    %15 = vsyncpa [#allocation7], 0
    %16 = vsyncpa [#allocation5], 0
    // Predicated region
    $region2: #{tpu_custom_call.1} parent=1 // pred_check
      _
    $region3: #{tpu_custom_call.1} parent=1 // pred_check_branch
      %18 = sbr.rel (0) target = $region5
    $region4: #{tpu_custom_call.1} parent=1 // pred_region
      %s20 = ssub.s32 1024, 256
      %21 = vsyncadd [#allocation4], %s20
      %s22 = sshll.u32 [#allocation3], 4
      %s23 = int_to_ptr.vmem [resolvable:$true] %s22
      %28 = dma.hbm_to_vmem [thread:$0]  %s0, 256, %s23, [#allocation4], 256, 256, 16
    $region5: #{tpu_custom_call.1} parent=1 // pred_fallthru
      _
    // Predicated region
    $region6: #{tpu_custom_call.1} parent=1 // pred_check
      _
    $region7: #{tpu_custom_call.1} parent=1 // pred_check_branch
      %30 = sbr.rel (0) target = $region9
    $region8: #{tpu_custom_call.1} parent=1 // pred_region
      %s32 = ssub.s32 32768, 32768
      %33 = vsyncadd [#allocation7], %s32
      %s34 = sshll.u32 [#allocation6], 4
      %s35 = int_to_ptr.vmem [resolvable:$true] %s34
      %40 = dma.hbm_to_vmem [thread:$0]  %s1, 32768, %s35, [#allocation7], 256, 256, 16
    $region9: #{tpu_custom_call.1} parent=1 // pred_fallthru
      _
    // Predicated region
    $region10: #{tpu_custom_call.1} parent=1 // pred_check
      _
    $region11: #{tpu_custom_call.1} parent=1 // pred_check_branch
      %42 = sbr.rel (0) target = $region13
    $region12: #{tpu_custom_call.1} parent=1 // pred_region
      _
    $region13: #{tpu_custom_call.1} parent=1 // pred_fallthru
      _
    // Predicated region
    $region14: #{tpu_custom_call.1} parent=1 // pred_check
      _
    $region15: #{tpu_custom_call.1} parent=1 // pred_check_branch
      %44 = sbr.rel (0) target = $region17
    $region16: #{tpu_custom_call.1} parent=1 // pred_region
      %s46 = ssub.s32 8192, 8192
      %47 = vsyncadd [#allocation7], %s46
      %s48 = sshll.u32 [#allocation8], 4
      %s49 = int_to_ptr.vmem [resolvable:$true] %s48
      %54 = dma.hbm_to_vmem [thread:$0]  %s3, 8192, %s49, [#allocation7], 128, 128, 8
    $region17: #{tpu_custom_call.1} parent=1 // pred_fallthru
      _
    // Predicated region
    $region18: #{tpu_custom_call.1} parent=1 // pred_check
      _
    $region19: #{tpu_custom_call.1} parent=1 // pred_check_branch
      %56 = sbr.rel (0) target = $region21
    $region20: #{tpu_custom_call.1} parent=1 // pred_region
      _
    $region21: #{tpu_custom_call.1} parent=1 // pred_fallthru
      _
    // Predicated region
    $region22: #{tpu_custom_call.1} parent=1 // pred_check
      _
    $region23: #{tpu_custom_call.1} parent=1 // pred_check_branch
      %58 = sbr.rel (0) target = $region25
    $region24: #{tpu_custom_call.1} parent=1 // pred_region
      _
    $region25: #{tpu_custom_call.1} parent=1 // pred_fallthru
      _
    // Predicated region
    $region26: #{tpu_custom_call.1} parent=1 // pred_check
      _
    $region27: #{tpu_custom_call.1} parent=1 // pred_check_branch
      %60 = sbr.rel (0) target = $region29
    $region28: #{tpu_custom_call.1} parent=1 // pred_region
      _
    $region29: #{tpu_custom_call.1} parent=1 // pred_fallthru
      _
    // Predicated region
    $region30: #{tpu_custom_call.1} parent=1 // pred_check
      _
    $region31: #{tpu_custom_call.1} parent=1 // pred_check_branch
      %62 = sbr.rel (0) target = $region33
    $region32: #{tpu_custom_call.1} parent=1 // pred_region
      %63 = dma.done [#allocation4], 1024
    $region33: #{tpu_custom_call.1} parent=1 // pred_fallthru
      _
    // Predicated region
    $region34: #{tpu_custom_call.1} parent=1 // pred_check
      _
    $region35: #{tpu_custom_call.1} parent=1 // pred_check_branch
      %65 = sbr.rel (0) target = $region37
    $region36: #{tpu_custom_call.1} parent=1 // pred_region
      %66 = dma.done [#allocation7], 32768
    $region37: #{tpu_custom_call.1} parent=1 // pred_fallthru
      _
    // Predicated region
    $region38: #{tpu_custom_call.1} parent=1 // pred_check
      _
    $region39: #{tpu_custom_call.1} parent=1 // pred_check_branch
      %68 = sbr.rel (0) target = $region41
    $region40: #{tpu_custom_call.1} parent=1 // pred_region
      %69 = dma.done [#allocation7], 8192
    $region41: #{tpu_custom_call.1} parent=1 // pred_fallthru
      _
    %v70 = vld [vmem:[#allocation3] sm:$0xff]
    %v71 = vld [vmem:[#allocation3 + $0x8] sm:$0xff]
    %v72 = vld [vmem:[#allocation3 + $0x10] sm:$0xff]
    %v73 = vld [vmem:[#allocation3 + $0x18] sm:$0xff]
    %v74 = vld [vmem:[#allocation3 + $0x20] sm:$0xff]
    %v75 = vld [vmem:[#allocation3 + $0x28] sm:$0xff]
    %v76 = vld [vmem:[#allocation3 + $0x30] sm:$0xff]
    %v77 = vld [vmem:[#allocation3 + $0x38] sm:$0xff]
    %v86 = vcombine.low %v70, %v72
    %v87 = vcombine.high %v70, %v72
    %v88 = vcombine.low %v74, %v76
    %v89 = vcombine.high %v74, %v76
    %v91 = vunpack.c.l.s4 1983009808
    %v92 = vunpack.c.0.s8 %v91
    %v93 = vlaneseq
    %v94 = vshrl.u32 %v93, 7
    %v95 = vsub.s32 %v92, %v94
    %v96 = vrot.slane %v86, %v95
    %v98 = vunpack.c.l.s4 1983009808
    %v99 = vunpack.c.0.s8 %v98
    %v100 = vlaneseq
    %v101 = vshrl.u32 %v100, 7
    %v102 = vsub.s32 %v99, %v101
    %v103 = vrot.slane %v87, %v102
    %v105 = vunpack.c.l.s4 1983009808
    %v106 = vunpack.c.0.s8 %v105
    %v107 = vlaneseq
    %v108 = vshrl.u32 %v107, 7
    %v109 = vsub.s32 %v106, %v108
    %v110 = vrot.slane %v88, %v109
    %v112 = vunpack.c.l.s4 1983009808
    %v113 = vunpack.c.0.s8 %v112
    %v114 = vlaneseq
    %v115 = vshrl.u32 %v114, 7
    %v116 = vsub.s32 %v113, %v115
    %v117 = vrot.slane %v89, %v116
    %v118 = vcombine.low %v96, %v110
    %v119 = vcombine.high %v96, %v110
    %v120 = vcombine.low %v103, %v117
    %v121 = vcombine.high %v103, %v117
    %v122 = vcombine.low %v71, %v73
    %v123 = vcombine.high %v71, %v73
    %v124 = vcombine.low %v75, %v77
    %v125 = vcombine.high %v75, %v77
    %v127 = vunpack.c.l.s4 1983009808
    %v128 = vunpack.c.0.s8 %v127
    %v129 = vlaneseq
    %v130 = vshrl.u32 %v129, 7
    %v131 = vsub.s32 %v128, %v130
    %v132 = vrot.slane %v122, %v131
    %v134 = vunpack.c.l.s4 1983009808
    %v135 = vunpack.c.0.s8 %v134
    %v136 = vlaneseq
    %v137 = vshrl.u32 %v136, 7
    %v138 = vsub.s32 %v135, %v137
    %v139 = vrot.slane %v123, %v138
    %v141 = vunpack.c.l.s4 1983009808
    %v142 = vunpack.c.0.s8 %v141
    %v143 = vlaneseq
    %v144 = vshrl.u32 %v143, 7
    %v145 = vsub.s32 %v142, %v144
    %v146 = vrot.slane %v124, %v145
    %v148 = vunpack.c.l.s4 1983009808
    %v149 = vunpack.c.0.s8 %v148
    %v150 = vlaneseq
    %v151 = vshrl.u32 %v150, 7
    %v152 = vsub.s32 %v149, %v151
    %v153 = vrot.slane %v125, %v152
    %v154 = vcombine.low %v132, %v146
    %v155 = vcombine.high %v132, %v146
    %v156 = vcombine.low %v139, %v153
    %v157 = vcombine.high %v139, %v153
    %v166 = vpack.c.bf16 %v118, %v118
    %v167 = vpack.c.bf16 %v119, %v119
    %v168 = vpack.c.bf16 %v120, %v120
    %v169 = vpack.c.bf16 %v121, %v121
    %v170 = vpack.c.bf16 %v154, %v154
    %v171 = vpack.c.bf16 %v155, %v155
    %v172 = vpack.c.bf16 %v156, %v156
    %v173 = vpack.c.bf16 %v157, %v157
    %v174 = vld [vmem:[#allocation6] sm:$0xff]
    %v175 = vld [vmem:[#allocation6 + $0x8] sm:$0xff]
    %v176 = vld [vmem:[#allocation6 + $0x10] sm:$0xff]
    %v177 = vld [vmem:[#allocation6 + $0x18] sm:$0xff]
    %v178 = vld [vmem:[#allocation6 + $0x20] sm:$0xff]
    %v179 = vld [vmem:[#allocation6 + $0x28] sm:$0xff]
    %v180 = vld [vmem:[#allocation6 + $0x30] sm:$0xff]
    %v181 = vld [vmem:[#allocation6 + $0x38] sm:$0xff]
    %v182 = vld [vmem:[#allocation6 + $0x40] sm:$0xff]
    %v183 = vld [vmem:[#allocation6 + $0x48] sm:$0xff]
    %v184 = vld [vmem:[#allocation6 + $0x50] sm:$0xff]
    %v185 = vld [vmem:[#allocation6 + $0x58] sm:$0xff]
    %v186 = vld [vmem:[#allocation6 + $0x60] sm:$0xff]
    %v187 = vld [vmem:[#allocation6 + $0x68] sm:$0xff]
    %v188 = vld [vmem:[#allocation6 + $0x70] sm:$0xff]
    %v189 = vld [vmem:[#allocation6 + $0x78] sm:$0xff]
    %v190 = vld [vmem:[#allocation6 + $0x80] sm:$0xff]
    %v191 = vld [vmem:[#allocation6 + $0x88] sm:$0xff]
    %v192 = vld [vmem:[#allocation6 + $0x90] sm:$0xff]
    %v193 = vld [vmem:[#allocation6 + $0x98] sm:$0xff]
    %v194 = vld [vmem:[#allocation6 + $0xa0] sm:$0xff]
    %v195 = vld [vmem:[#allocation6 + $0xa8] sm:$0xff]
    %v196 = vld [vmem:[#allocation6 + $0xb0] sm:$0xff]
    %v197 = vld [vmem:[#allocation6 + $0xb8] sm:$0xff]
    %v198 = vld [vmem:[#allocation6 + $0xc0] sm:$0xff]
    %v199 = vld [vmem:[#allocation6 + $0xc8] sm:$0xff]
    %v200 = vld [vmem:[#allocation6 + $0xd0] sm:$0xff]
    %v201 = vld [vmem:[#allocation6 + $0xd8] sm:$0xff]
    %v202 = vld [vmem:[#allocation6 + $0xe0] sm:$0xff]
    %v203 = vld [vmem:[#allocation6 + $0xe8] sm:$0xff]
    %v204 = vld [vmem:[#allocation6 + $0xf0] sm:$0xff]
    %v205 = vld [vmem:[#allocation6 + $0xf8] sm:$0xff]
    %v206 = vld [vmem:[#allocation6 + $0x100] sm:$0xff]
    %v207 = vld [vmem:[#allocation6 + $0x108] sm:$0xff]
    %v208 = vld [vmem:[#allocation6 + $0x110] sm:$0xff]
    %v209 = vld [vmem:[#allocation6 + $0x118] sm:$0xff]
    %v210 = vld [vmem:[#allocation6 + $0x120] sm:$0xff]
    %v211 = vld [vmem:[#allocation6 + $0x128] sm:$0xff]
    %v212 = vld [vmem:[#allocation6 + $0x130] sm:$0xff]
    %v213 = vld [vmem:[#allocation6 + $0x138] sm:$0xff]
    %v214 = vld [vmem:[#allocation6 + $0x140] sm:$0xff]
    %v215 = vld [vmem:[#allocation6 + $0x148] sm:$0xff]
    %v216 = vld [vmem:[#allocation6 + $0x150] sm:$0xff]
    %v217 = vld [vmem:[#allocation6 + $0x158] sm:$0xff]
    %v218 = vld [vmem:[#allocation6 + $0x160] sm:$0xff]
    %v219 = vld [vmem:[#allocation6 + $0x168] sm:$0xff]
    %v220 = vld [vmem:[#allocation6 + $0x170] sm:$0xff]
    %v221 = vld [vmem:[#allocation6 + $0x178] sm:$0xff]
    %v222 = vld [vmem:[#allocation6 + $0x180] sm:$0xff]
    %v223 = vld [vmem:[#allocation6 + $0x188] sm:$0xff]
    %v224 = vld [vmem:[#allocation6 + $0x190] sm:$0xff]
    %v225 = vld [vmem:[#allocation6 + $0x198] sm:$0xff]
    %v226 = vld [vmem:[#allocation6 + $0x1a0] sm:$0xff]
    %v227 = vld [vmem:[#allocation6 + $0x1a8] sm:$0xff]
    %v228 = vld [vmem:[#allocation6 + $0x1b0] sm:$0xff]
    %v229 = vld [vmem:[#allocation6 + $0x1b8] sm:$0xff]
    %v230 = vld [vmem:[#allocation6 + $0x1c0] sm:$0xff]
    %v231 = vld [vmem:[#allocation6 + $0x1c8] sm:$0xff]
    %v232 = vld [vmem:[#allocation6 + $0x1d0] sm:$0xff]
    %v233 = vld [vmem:[#allocation6 + $0x1d8] sm:$0xff]
    %v234 = vld [vmem:[#allocation6 + $0x1e0] sm:$0xff]
    %v235 = vld [vmem:[#allocation6 + $0x1e8] sm:$0xff]
    %v236 = vld [vmem:[#allocation6 + $0x1f0] sm:$0xff]
    %v237 = vld [vmem:[#allocation6 + $0x1f8] sm:$0xff]
    %v238 = vld [vmem:[#allocation6 + $0x200] sm:$0xff]
    %v239 = vld [vmem:[#allocation6 + $0x208] sm:$0xff]
    %v240 = vld [vmem:[#allocation6 + $0x210] sm:$0xff]
    %v241 = vld [vmem:[#allocation6 + $0x218] sm:$0xff]
    %v242 = vld [vmem:[#allocation6 + $0x220] sm:$0xff]
    %v243 = vld [vmem:[#allocation6 + $0x228] sm:$0xff]
    %v244 = vld [vmem:[#allocation6 + $0x230] sm:$0xff]
    %v245 = vld [vmem:[#allocation6 + $0x238] sm:$0xff]
    %v246 = vld [vmem:[#allocation6 + $0x240] sm:$0xff]
    %v247 = vld [vmem:[#allocation6 + $0x248] sm:$0xff]
    %v248 = vld [vmem:[#allocation6 + $0x250] sm:$0xff]
    %v249 = vld [vmem:[#allocation6 + $0x258] sm:$0xff]
    %v250 = vld [vmem:[#allocation6 + $0x260] sm:$0xff]
    %v251 = vld [vmem:[#allocation6 + $0x268] sm:$0xff]
    %v252 = vld [vmem:[#allocation6 + $0x270] sm:$0xff]
    %v253 = vld [vmem:[#allocation6 + $0x278] sm:$0xff]
    %v254 = vld [vmem:[#allocation6 + $0x280] sm:$0xff]
    %v255 = vld [vmem:[#allocation6 + $0x288] sm:$0xff]
    %v256 = vld [vmem:[#allocation6 + $0x290] sm:$0xff]
    %v257 = vld [vmem:[#allocation6 + $0x298] sm:$0xff]
    %v258 = vld [vmem:[#allocation6 + $0x2a0] sm:$0xff]
    %v259 = vld [vmem:[#allocation6 + $0x2a8] sm:$0xff]
    %v260 = vld [vmem:[#allocation6 + $0x2b0] sm:$0xff]
    %v261 = vld [vmem:[#allocation6 + $0x2b8] sm:$0xff]
    %v262 = vld [vmem:[#allocation6 + $0x2c0] sm:$0xff]
    %v263 = vld [vmem:[#allocation6 + $0x2c8] sm:$0xff]
    %v264 = vld [vmem:[#allocation6 + $0x2d0] sm:$0xff]
    %v265 = vld [vmem:[#allocation6 + $0x2d8] sm:$0xff]
    %v266 = vld [vmem:[#allocation6 + $0x2e0] sm:$0xff]
    %v267 = vld [vmem:[#allocation6 + $0x2e8] sm:$0xff]
    %v268 = vld [vmem:[#allocation6 + $0x2f0] sm:$0xff]
    %v269 = vld [vmem:[#allocation6 + $0x2f8] sm:$0xff]
    %v270 = vld [vmem:[#allocation6 + $0x300] sm:$0xff]
    %v271 = vld [vmem:[#allocation6 + $0x308] sm:$0xff]
    %v272 = vld [vmem:[#allocation6 + $0x310] sm:$0xff]
    %v273 = vld [vmem:[#allocation6 + $0x318] sm:$0xff]
    %v274 = vld [vmem:[#allocation6 + $0x320] sm:$0xff]
    %v275 = vld [vmem:[#allocation6 + $0x328] sm:$0xff]
    %v276 = vld [vmem:[#allocation6 + $0x330] sm:$0xff]
    %v277 = vld [vmem:[#allocation6 + $0x338] sm:$0xff]
    %v278 = vld [vmem:[#allocation6 + $0x340] sm:$0xff]
    %v279 = vld [vmem:[#allocation6 + $0x348] sm:$0xff]
    %v280 = vld [vmem:[#allocation6 + $0x350] sm:$0xff]
    %v281 = vld [vmem:[#allocation6 + $0x358] sm:$0xff]
    %v282 = vld [vmem:[#allocation6 + $0x360] sm:$0xff]
    %v283 = vld [vmem:[#allocation6 + $0x368] sm:$0xff]
    %v284 = vld [vmem:[#allocation6 + $0x370] sm:$0xff]
    %v285 = vld [vmem:[#allocation6 + $0x378] sm:$0xff]
    %v286 = vld [vmem:[#allocation6 + $0x380] sm:$0xff]
    %v287 = vld [vmem:[#allocation6 + $0x388] sm:$0xff]
    %v288 = vld [vmem:[#allocation6 + $0x390] sm:$0xff]
    %v289 = vld [vmem:[#allocation6 + $0x398] sm:$0xff]
    %v290 = vld [vmem:[#allocation6 + $0x3a0] sm:$0xff]
    %v291 = vld [vmem:[#allocation6 + $0x3a8] sm:$0xff]
    %v292 = vld [vmem:[#allocation6 + $0x3b0] sm:$0xff]
    %v293 = vld [vmem:[#allocation6 + $0x3b8] sm:$0xff]
    %v294 = vld [vmem:[#allocation6 + $0x3c0] sm:$0xff]
    %v295 = vld [vmem:[#allocation6 + $0x3c8] sm:$0xff]
    %v296 = vld [vmem:[#allocation6 + $0x3d0] sm:$0xff]
    %v297 = vld [vmem:[#allocation6 + $0x3d8] sm:$0xff]
    %v298 = vld [vmem:[#allocation6 + $0x3e0] sm:$0xff]
    %v299 = vld [vmem:[#allocation6 + $0x3e8] sm:$0xff]
    %v300 = vld [vmem:[#allocation6 + $0x3f0] sm:$0xff]
    %v301 = vld [vmem:[#allocation6 + $0x3f8] sm:$0xff]
    %v302 = vld [vmem:[#allocation6 + $0x400] sm:$0xff]
    %v303 = vld [vmem:[#allocation6 + $0x408] sm:$0xff]
    %v304 = vld [vmem:[#allocation6 + $0x410] sm:$0xff]
    %v305 = vld [vmem:[#allocation6 + $0x418] sm:$0xff]
    %v306 = vld [vmem:[#allocation6 + $0x420] sm:$0xff]
    %v307 = vld [vmem:[#allocation6 + $0x428] sm:$0xff]
    %v308 = vld [vmem:[#allocation6 + $0x430] sm:$0xff]
    %v309 = vld [vmem:[#allocation6 + $0x438] sm:$0xff]
    %v310 = vld [vmem:[#allocation6 + $0x440] sm:$0xff]
    %v311 = vld [vmem:[#allocation6 + $0x448] sm:$0xff]
    %v312 = vld [vmem:[#allocation6 + $0x450] sm:$0xff]
    %v313 = vld [vmem:[#allocation6 + $0x458] sm:$0xff]
    %v314 = vld [vmem:[#allocation6 + $0x460] sm:$0xff]
    %v315 = vld [vmem:[#allocation6 + $0x468] sm:$0xff]
    %v316 = vld [vmem:[#allocation6 + $0x470] sm:$0xff]
    %v317 = vld [vmem:[#allocation6 + $0x478] sm:$0xff]
    %v318 = vld [vmem:[#allocation6 + $0x480] sm:$0xff]
    %v319 = vld [vmem:[#allocation6 + $0x488] sm:$0xff]
    %v320 = vld [vmem:[#allocation6 + $0x490] sm:$0xff]
    %v321 = vld [vmem:[#allocation6 + $0x498] sm:$0xff]
    %v322 = vld [vmem:[#allocation6 + $0x4a0] sm:$0xff]
    %v323 = vld [vmem:[#allocation6 + $0x4a8] sm:$0xff]
    %v324 = vld [vmem:[#allocation6 + $0x4b0] sm:$0xff]
    %v325 = vld [vmem:[#allocation6 + $0x4b8] sm:$0xff]
    %v326 = vld [vmem:[#allocation6 + $0x4c0] sm:$0xff]
    %v327 = vld [vmem:[#allocation6 + $0x4c8] sm:$0xff]
    %v328 = vld [vmem:[#allocation6 + $0x4d0] sm:$0xff]
    %v329 = vld [vmem:[#allocation6 + $0x4d8] sm:$0xff]
    %v330 = vld [vmem:[#allocation6 + $0x4e0] sm:$0xff]
    %v331 = vld [vmem:[#allocation6 + $0x4e8] sm:$0xff]
    %v332 = vld [vmem:[#allocation6 + $0x4f0] sm:$0xff]
    %v333 = vld [vmem:[#allocation6 + $0x4f8] sm:$0xff]
    %v334 = vld [vmem:[#allocation6 + $0x500] sm:$0xff]
    %v335 = vld [vmem:[#allocation6 + $0x508] sm:$0xff]
    %v336 = vld [vmem:[#allocation6 + $0x510] sm:$0xff]
    %v337 = vld [vmem:[#allocation6 + $0x518] sm:$0xff]
    %v338 = vld [vmem:[#allocation6 + $0x520] sm:$0xff]
    %v339 = vld [vmem:[#allocation6 + $0x528] sm:$0xff]
    %v340 = vld [vmem:[#allocation6 + $0x530] sm:$0xff]
    %v341 = vld [vmem:[#allocation6 + $0x538] sm:$0xff]
    %v342 = vld [vmem:[#allocation6 + $0x540] sm:$0xff]
    %v343 = vld [vmem:[#allocation6 + $0x548] sm:$0xff]
    %v344 = vld [vmem:[#allocation6 + $0x550] sm:$0xff]
    %v345 = vld [vmem:[#allocation6 + $0x558] sm:$0xff]
    %v346 = vld [vmem:[#allocation6 + $0x560] sm:$0xff]
    %v347 = vld [vmem:[#allocation6 + $0x568] sm:$0xff]
    %v348 = vld [vmem:[#allocation6 + $0x570] sm:$0xff]
    %v349 = vld [vmem:[#allocation6 + $0x578] sm:$0xff]
    %v350 = vld [vmem:[#allocation6 + $0x580] sm:$0xff]
    %v351 = vld [vmem:[#allocation6 + $0x588] sm:$0xff]
    %v352 = vld [vmem:[#allocation6 + $0x590] sm:$0xff]
    %v353 = vld [vmem:[#allocation6 + $0x598] sm:$0xff]
    %v354 = vld [vmem:[#allocation6 + $0x5a0] sm:$0xff]
    %v355 = vld [vmem:[#allocation6 + $0x5a8] sm:$0xff]
    %v356 = vld [vmem:[#allocation6 + $0x5b0] sm:$0xff]
    %v357 = vld [vmem:[#allocation6 + $0x5b8] sm:$0xff]
    %v358 = vld [vmem:[#allocation6 + $0x5c0] sm:$0xff]
    %v359 = vld [vmem:[#allocation6 + $0x5c8] sm:$0xff]
    %v360 = vld [vmem:[#allocation6 + $0x5d0] sm:$0xff]
    %v361 = vld [vmem:[#allocation6 + $0x5d8] sm:$0xff]
    %v362 = vld [vmem:[#allocation6 + $0x5e0] sm:$0xff]
    %v363 = vld [vmem:[#allocation6 + $0x5e8] sm:$0xff]
    %v364 = vld [vmem:[#allocation6 + $0x5f0] sm:$0xff]
    %v365 = vld [vmem:[#allocation6 + $0x5f8] sm:$0xff]
    %v366 = vld [vmem:[#allocation6 + $0x600] sm:$0xff]
    %v367 = vld [vmem:[#allocation6 + $0x608] sm:$0xff]
    %v368 = vld [vmem:[#allocation6 + $0x610] sm:$0xff]
    %v369 = vld [vmem:[#allocation6 + $0x618] sm:$0xff]
    %v370 = vld [vmem:[#allocation6 + $0x620] sm:$0xff]
    %v371 = vld [vmem:[#allocation6 + $0x628] sm:$0xff]
    %v372 = vld [vmem:[#allocation6 + $0x630] sm:$0xff]
    %v373 = vld [vmem:[#allocation6 + $0x638] sm:$0xff]
    %v374 = vld [vmem:[#allocation6 + $0x640] sm:$0xff]
    %v375 = vld [vmem:[#allocation6 + $0x648] sm:$0xff]
    %v376 = vld [vmem:[#allocation6 + $0x650] sm:$0xff]
    %v377 = vld [vmem:[#allocation6 + $0x658] sm:$0xff]
    %v378 = vld [vmem:[#allocation6 + $0x660] sm:$0xff]
    %v379 = vld [vmem:[#allocation6 + $0x668] sm:$0xff]
    %v380 = vld [vmem:[#allocation6 + $0x670] sm:$0xff]
    %v381 = vld [vmem:[#allocation6 + $0x678] sm:$0xff]
    %v382 = vld [vmem:[#allocation6 + $0x680] sm:$0xff]
    %v383 = vld [vmem:[#allocation6 + $0x688] sm:$0xff]
    %v384 = vld [vmem:[#allocation6 + $0x690] sm:$0xff]
    %v385 = vld [vmem:[#allocation6 + $0x698] sm:$0xff]
    %v386 = vld [vmem:[#allocation6 + $0x6a0] sm:$0xff]
    %v387 = vld [vmem:[#allocation6 + $0x6a8] sm:$0xff]
    %v388 = vld [vmem:[#allocation6 + $0x6b0] sm:$0xff]
    %v389 = vld [vmem:[#allocation6 + $0x6b8] sm:$0xff]
    %v390 = vld [vmem:[#allocation6 + $0x6c0] sm:$0xff]
    %v391 = vld [vmem:[#allocation6 + $0x6c8] sm:$0xff]
    %v392 = vld [vmem:[#allocation6 + $0x6d0] sm:$0xff]
    %v393 = vld [vmem:[#allocation6 + $0x6d8] sm:$0xff]
    %v394 = vld [vmem:[#allocation6 + $0x6e0] sm:$0xff]
    %v395 = vld [vmem:[#allocation6 + $0x6e8] sm:$0xff]
    %v396 = vld [vmem:[#allocation6 + $0x6f0] sm:$0xff]
    %v397 = vld [vmem:[#allocation6 + $0x6f8] sm:$0xff]
    %v398 = vld [vmem:[#allocation6 + $0x700] sm:$0xff]
    %v399 = vld [vmem:[#allocation6 + $0x708] sm:$0xff]
    %v400 = vld [vmem:[#allocation6 + $0x710] sm:$0xff]
    %v401 = vld [vmem:[#allocation6 + $0x718] sm:$0xff]
    %v402 = vld [vmem:[#allocation6 + $0x720] sm:$0xff]
    %v403 = vld [vmem:[#allocation6 + $0x728] sm:$0xff]
    %v404 = vld [vmem:[#allocation6 + $0x730] sm:$0xff]
    %v405 = vld [vmem:[#allocation6 + $0x738] sm:$0xff]
    %v406 = vld [vmem:[#allocation6 + $0x740] sm:$0xff]
    %v407 = vld [vmem:[#allocation6 + $0x748] sm:$0xff]
    %v408 = vld [vmem:[#allocation6 + $0x750] sm:$0xff]
    %v409 = vld [vmem:[#allocation6 + $0x758] sm:$0xff]
    %v410 = vld [vmem:[#allocation6 + $0x760] sm:$0xff]
    %v411 = vld [vmem:[#allocation6 + $0x768] sm:$0xff]
    %v412 = vld [vmem:[#allocation6 + $0x770] sm:$0xff]
    %v413 = vld [vmem:[#allocation6 + $0x778] sm:$0xff]
    %v414 = vld [vmem:[#allocation6 + $0x780] sm:$0xff]
    %v415 = vld [vmem:[#allocation6 + $0x788] sm:$0xff]
    %v416 = vld [vmem:[#allocation6 + $0x790] sm:$0xff]
    %v417 = vld [vmem:[#allocation6 + $0x798] sm:$0xff]
    %v418 = vld [vmem:[#allocation6 + $0x7a0] sm:$0xff]
    %v419 = vld [vmem:[#allocation6 + $0x7a8] sm:$0xff]
    %v420 = vld [vmem:[#allocation6 + $0x7b0] sm:$0xff]
    %v421 = vld [vmem:[#allocation6 + $0x7b8] sm:$0xff]
    %v422 = vld [vmem:[#allocation6 + $0x7c0] sm:$0xff]
    %v423 = vld [vmem:[#allocation6 + $0x7c8] sm:$0xff]
    %v424 = vld [vmem:[#allocation6 + $0x7d0] sm:$0xff]
    %v425 = vld [vmem:[#allocation6 + $0x7d8] sm:$0xff]
    %v426 = vld [vmem:[#allocation6 + $0x7e0] sm:$0xff]
    %v427 = vld [vmem:[#allocation6 + $0x7e8] sm:$0xff]
    %v428 = vld [vmem:[#allocation6 + $0x7f0] sm:$0xff]
    %v429 = vld [vmem:[#allocation6 + $0x7f8] sm:$0xff]
    %v430 = vld [vmem:[%s2] sm:$0xf]
    %v432 = vlaneseq
    %v433 = vshrl.u32 %v432, 7
    %v434 = vsub.s32 0, %v433
    %v435 = vrot.slane %v430, %v434
    %v436 = vlaneseq
    %v437 = vshrl.u32 %v436, 7
    %v438 = vsub.s32 1, %v437
    %v439 = vrot.slane %v430, %v438
    %v440 = vlaneseq
    %v441 = vshrl.u32 %v440, 7
    %v442 = vsub.s32 2, %v441
    %v443 = vrot.slane %v430, %v442
    %v444 = vlaneseq
    %v445 = vshrl.u32 %v444, 7
    %v446 = vsub.s32 3, %v445
    %v447 = vrot.slane %v430, %v446
    %v708 = vunpack.c.l.b16 %v174
    %v709 = vunpack.c.h.b16 %v174
    %v710 = vunpack.c.l.b16 %v175
    %v711 = vunpack.c.h.b16 %v175
    %v712 = vunpack.c.l.b16 %v176
    %v713 = vunpack.c.h.b16 %v176
    %v714 = vunpack.c.l.b16 %v177
    %v715 = vunpack.c.h.b16 %v177
    %v716 = vunpack.c.l.b16 %v178
    %v717 = vunpack.c.h.b16 %v178
    %v718 = vunpack.c.l.b16 %v179
    %v719 = vunpack.c.h.b16 %v179
    %v720 = vunpack.c.l.b16 %v180
    %v721 = vunpack.c.h.b16 %v180
    %v722 = vunpack.c.l.b16 %v181
    %v723 = vunpack.c.h.b16 %v181
    %v724 = vunpack.c.l.b16 %v182
    %v725 = vunpack.c.h.b16 %v182
    %v726 = vunpack.c.l.b16 %v183
    %v727 = vunpack.c.h.b16 %v183
    %v728 = vunpack.c.l.b16 %v184
    %v729 = vunpack.c.h.b16 %v184
    %v730 = vunpack.c.l.b16 %v185
    %v731 = vunpack.c.h.b16 %v185
    %v732 = vunpack.c.l.b16 %v186
    %v733 = vunpack.c.h.b16 %v186
    %v734 = vunpack.c.l.b16 %v187
    %v735 = vunpack.c.h.b16 %v187
    %v736 = vunpack.c.l.b16 %v188
    %v737 = vunpack.c.h.b16 %v188
    %v738 = vunpack.c.l.b16 %v189
    %v739 = vunpack.c.h.b16 %v189
    %v740 = vunpack.c.l.b16 %v190
    %v741 = vunpack.c.h.b16 %v190
    %v742 = vunpack.c.l.b16 %v191
    %v743 = vunpack.c.h.b16 %v191
    %v744 = vunpack.c.l.b16 %v192
    %v745 = vunpack.c.h.b16 %v192
    %v746 = vunpack.c.l.b16 %v193
    %v747 = vunpack.c.h.b16 %v193
    %v748 = vunpack.c.l.b16 %v194
    %v749 = vunpack.c.h.b16 %v194
    %v750 = vunpack.c.l.b16 %v195
    %v751 = vunpack.c.h.b16 %v195
    %v752 = vunpack.c.l.b16 %v196
    %v753 = vunpack.c.h.b16 %v196
    %v754 = vunpack.c.l.b16 %v197
    %v755 = vunpack.c.h.b16 %v197
    %v756 = vunpack.c.l.b16 %v198
    %v757 = vunpack.c.h.b16 %v198
    %v758 = vunpack.c.l.b16 %v199
    %v759 = vunpack.c.h.b16 %v199
    %v760 = vunpack.c.l.b16 %v200
    %v761 = vunpack.c.h.b16 %v200
    %v762 = vunpack.c.l.b16 %v201
    %v763 = vunpack.c.h.b16 %v201
    %v764 = vunpack.c.l.b16 %v202
    %v765 = vunpack.c.h.b16 %v202
    %v766 = vunpack.c.l.b16 %v203
    %v767 = vunpack.c.h.b16 %v203
    %v768 = vunpack.c.l.b16 %v204
    %v769 = vunpack.c.h.b16 %v204
    %v770 = vunpack.c.l.b16 %v205
    %v771 = vunpack.c.h.b16 %v205
    %v772 = vunpack.c.l.b16 %v206
    %v773 = vunpack.c.h.b16 %v206
    %v774 = vunpack.c.l.b16 %v207
    %v775 = vunpack.c.h.b16 %v207
    %v776 = vunpack.c.l.b16 %v208
    %v777 = vunpack.c.h.b16 %v208
    %v778 = vunpack.c.l.b16 %v209
    %v779 = vunpack.c.h.b16 %v209
    %v780 = vunpack.c.l.b16 %v210
    %v781 = vunpack.c.h.b16 %v210
    %v782 = vunpack.c.l.b16 %v211
    %v783 = vunpack.c.h.b16 %v211
    %v784 = vunpack.c.l.b16 %v212
    %v785 = vunpack.c.h.b16 %v212
    %v786 = vunpack.c.l.b16 %v213
    %v787 = vunpack.c.h.b16 %v213
    %v788 = vunpack.c.l.b16 %v214
    %v789 = vunpack.c.h.b16 %v214
    %v790 = vunpack.c.l.b16 %v215
    %v791 = vunpack.c.h.b16 %v215
    %v792 = vunpack.c.l.b16 %v216
    %v793 = vunpack.c.h.b16 %v216
    %v794 = vunpack.c.l.b16 %v217
    %v795 = vunpack.c.h.b16 %v217
    %v796 = vunpack.c.l.b16 %v218
    %v797 = vunpack.c.h.b16 %v218
    %v798 = vunpack.c.l.b16 %v219
    %v799 = vunpack.c.h.b16 %v219
    %v800 = vunpack.c.l.b16 %v220
    %v801 = vunpack.c.h.b16 %v220
    %v802 = vunpack.c.l.b16 %v221
    %v803 = vunpack.c.h.b16 %v221
    %v804 = vunpack.c.l.b16 %v222
    %v805 = vunpack.c.h.b16 %v222
    %v806 = vunpack.c.l.b16 %v223
    %v807 = vunpack.c.h.b16 %v223
    %v808 = vunpack.c.l.b16 %v224
    %v809 = vunpack.c.h.b16 %v224
    %v810 = vunpack.c.l.b16 %v225
    %v811 = vunpack.c.h.b16 %v225
    %v812 = vunpack.c.l.b16 %v226
    %v813 = vunpack.c.h.b16 %v226
    %v814 = vunpack.c.l.b16 %v227
    %v815 = vunpack.c.h.b16 %v227
    %v816 = vunpack.c.l.b16 %v228
    %v817 = vunpack.c.h.b16 %v228
    %v818 = vunpack.c.l.b16 %v229
    %v819 = vunpack.c.h.b16 %v229
    %v820 = vunpack.c.l.b16 %v230
    %v821 = vunpack.c.h.b16 %v230
    %v822 = vunpack.c.l.b16 %v231
    %v823 = vunpack.c.h.b16 %v231
    %v824 = vunpack.c.l.b16 %v232
    %v825 = vunpack.c.h.b16 %v232
    %v826 = vunpack.c.l.b16 %v233
    %v827 = vunpack.c.h.b16 %v233
    %v828 = vunpack.c.l.b16 %v234
    %v829 = vunpack.c.h.b16 %v234
    %v830 = vunpack.c.l.b16 %v235
    %v831 = vunpack.c.h.b16 %v235
    %v832 = vunpack.c.l.b16 %v236
    %v833 = vunpack.c.h.b16 %v236
    %v834 = vunpack.c.l.b16 %v237
    %v835 = vunpack.c.h.b16 %v237
    %v836 = vunpack.c.l.b16 %v238
    %v837 = vunpack.c.h.b16 %v238
    %v838 = vunpack.c.l.b16 %v239
    %v839 = vunpack.c.h.b16 %v239
    %v840 = vunpack.c.l.b16 %v240
    %v841 = vunpack.c.h.b16 %v240
    %v842 = vunpack.c.l.b16 %v241
    %v843 = vunpack.c.h.b16 %v241
    %v844 = vunpack.c.l.b16 %v242
    %v845 = vunpack.c.h.b16 %v242
    %v846 = vunpack.c.l.b16 %v243
    %v847 = vunpack.c.h.b16 %v243
    %v848 = vunpack.c.l.b16 %v244
    %v849 = vunpack.c.h.b16 %v244
    %v850 = vunpack.c.l.b16 %v245
    %v851 = vunpack.c.h.b16 %v245
    %v852 = vunpack.c.l.b16 %v246
    %v853 = vunpack.c.h.b16 %v246
    %v854 = vunpack.c.l.b16 %v247
    %v855 = vunpack.c.h.b16 %v247
    %v856 = vunpack.c.l.b16 %v248
    %v857 = vunpack.c.h.b16 %v248
    %v858 = vunpack.c.l.b16 %v249
    %v859 = vunpack.c.h.b16 %v249
    %v860 = vunpack.c.l.b16 %v250
    %v861 = vunpack.c.h.b16 %v250
    %v862 = vunpack.c.l.b16 %v251
    %v863 = vunpack.c.h.b16 %v251
    %v864 = vunpack.c.l.b16 %v252
    %v865 = vunpack.c.h.b16 %v252
    %v866 = vunpack.c.l.b16 %v253
    %v867 = vunpack.c.h.b16 %v253
    %v868 = vunpack.c.l.b16 %v254
    %v869 = vunpack.c.h.b16 %v254
    %v870 = vunpack.c.l.b16 %v255
    %v871 = vunpack.c.h.b16 %v255
    %v872 = vunpack.c.l.b16 %v256
    %v873 = vunpack.c.h.b16 %v256
    %v874 = vunpack.c.l.b16 %v257
    %v875 = vunpack.c.h.b16 %v257
    %v876 = vunpack.c.l.b16 %v258
    %v877 = vunpack.c.h.b16 %v258
    %v878 = vunpack.c.l.b16 %v259
    %v879 = vunpack.c.h.b16 %v259
    %v880 = vunpack.c.l.b16 %v260
    %v881 = vunpack.c.h.b16 %v260
    %v882 = vunpack.c.l.b16 %v261
    %v883 = vunpack.c.h.b16 %v261
    %v884 = vunpack.c.l.b16 %v262
    %v885 = vunpack.c.h.b16 %v262
    %v886 = vunpack.c.l.b16 %v263
    %v887 = vunpack.c.h.b16 %v263
    %v888 = vunpack.c.l.b16 %v264
    %v889 = vunpack.c.h.b16 %v264
    %v890 = vunpack.c.l.b16 %v265
    %v891 = vunpack.c.h.b16 %v265
    %v892 = vunpack.c.l.b16 %v266
    %v893 = vunpack.c.h.b16 %v266
    %v894 = vunpack.c.l.b16 %v267
    %v895 = vunpack.c.h.b16 %v267
    %v896 = vunpack.c.l.b16 %v268
    %v897 = vunpack.c.h.b16 %v268
    %v898 = vunpack.c.l.b16 %v269
    %v899 = vunpack.c.h.b16 %v269
    %v900 = vunpack.c.l.b16 %v270
    %v901 = vunpack.c.h.b16 %v270
    %v902 = vunpack.c.l.b16 %v271
    %v903 = vunpack.c.h.b16 %v271
    %v904 = vunpack.c.l.b16 %v272
    %v905 = vunpack.c.h.b16 %v272
    %v906 = vunpack.c.l.b16 %v273
    %v907 = vunpack.c.h.b16 %v273
    %v908 = vunpack.c.l.b16 %v274
    %v909 = vunpack.c.h.b16 %v274
    %v910 = vunpack.c.l.b16 %v275
    %v911 = vunpack.c.h.b16 %v275
    %v912 = vunpack.c.l.b16 %v276
    %v913 = vunpack.c.h.b16 %v276
    %v914 = vunpack.c.l.b16 %v277
    %v915 = vunpack.c.h.b16 %v277
    %v916 = vunpack.c.l.b16 %v278
    %v917 = vunpack.c.h.b16 %v278
    %v918 = vunpack.c.l.b16 %v279
    %v919 = vunpack.c.h.b16 %v279
    %v920 = vunpack.c.l.b16 %v280
    %v921 = vunpack.c.h.b16 %v280
    %v922 = vunpack.c.l.b16 %v281
    %v923 = vunpack.c.h.b16 %v281
    %v924 = vunpack.c.l.b16 %v282
    %v925 = vunpack.c.h.b16 %v282
    %v926 = vunpack.c.l.b16 %v283
    %v927 = vunpack.c.h.b16 %v283
    %v928 = vunpack.c.l.b16 %v284
    %v929 = vunpack.c.h.b16 %v284
    %v930 = vunpack.c.l.b16 %v285
    %v931 = vunpack.c.h.b16 %v285
    %v932 = vunpack.c.l.b16 %v286
    %v933 = vunpack.c.h.b16 %v286
    %v934 = vunpack.c.l.b16 %v287
    %v935 = vunpack.c.h.b16 %v287
    %v936 = vunpack.c.l.b16 %v288
    %v937 = vunpack.c.h.b16 %v288
    %v938 = vunpack.c.l.b16 %v289
    %v939 = vunpack.c.h.b16 %v289
    %v940 = vunpack.c.l.b16 %v290
    %v941 = vunpack.c.h.b16 %v290
    %v942 = vunpack.c.l.b16 %v291
    %v943 = vunpack.c.h.b16 %v291
    %v944 = vunpack.c.l.b16 %v292
    %v945 = vunpack.c.h.b16 %v292
    %v946 = vunpack.c.l.b16 %v293
    %v947 = vunpack.c.h.b16 %v293
    %v948 = vunpack.c.l.b16 %v294
    %v949 = vunpack.c.h.b16 %v294
    %v950 = vunpack.c.l.b16 %v295
    %v951 = vunpack.c.h.b16 %v295
    %v952 = vunpack.c.l.b16 %v296
    %v953 = vunpack.c.h.b16 %v296
    %v954 = vunpack.c.l.b16 %v297
    %v955 = vunpack.c.h.b16 %v297
    %v956 = vunpack.c.l.b16 %v298
    %v957 = vunpack.c.h.b16 %v298
    %v958 = vunpack.c.l.b16 %v299
    %v959 = vunpack.c.h.b16 %v299
    %v960 = vunpack.c.l.b16 %v300
    %v961 = vunpack.c.h.b16 %v300
    %v962 = vunpack.c.l.b16 %v301
    %v963 = vunpack.c.h.b16 %v301
    %v964 = vunpack.c.l.b16 %v302
    %v965 = vunpack.c.h.b16 %v302
    %v966 = vunpack.c.l.b16 %v303
    %v967 = vunpack.c.h.b16 %v303
    %v968 = vunpack.c.l.b16 %v304
    %v969 = vunpack.c.h.b16 %v304
    %v970 = vunpack.c.l.b16 %v305
    %v971 = vunpack.c.h.b16 %v305
    %v972 = vunpack.c.l.b16 %v306
    %v973 = vunpack.c.h.b16 %v306
    %v974 = vunpack.c.l.b16 %v307
    %v975 = vunpack.c.h.b16 %v307
    %v976 = vunpack.c.l.b16 %v308
    %v977 = vunpack.c.h.b16 %v308
    %v978 = vunpack.c.l.b16 %v309
    %v979 = vunpack.c.h.b16 %v309
    %v980 = vunpack.c.l.b16 %v310
    %v981 = vunpack.c.h.b16 %v310
    %v982 = vunpack.c.l.b16 %v311
    %v983 = vunpack.c.h.b16 %v311
    %v984 = vunpack.c.l.b16 %v312
    %v985 = vunpack.c.h.b16 %v312
    %v986 = vunpack.c.l.b16 %v313
    %v987 = vunpack.c.h.b16 %v313
    %v988 = vunpack.c.l.b16 %v314
    %v989 = vunpack.c.h.b16 %v314
    %v990 = vunpack.c.l.b16 %v315
    %v991 = vunpack.c.h.b16 %v315
    %v992 = vunpack.c.l.b16 %v316
    %v993 = vunpack.c.h.b16 %v316
    %v994 = vunpack.c.l.b16 %v317
    %v995 = vunpack.c.h.b16 %v317
    %v996 = vunpack.c.l.b16 %v318
    %v997 = vunpack.c.h.b16 %v318
    %v998 = vunpack.c.l.b16 %v319
    %v999 = vunpack.c.h.b16 %v319
    %v1000 = vunpack.c.l.b16 %v320
    %v1001 = vunpack.c.h.b16 %v320
    %v1002 = vunpack.c.l.b16 %v321
    %v1003 = vunpack.c.h.b16 %v321
    %v1004 = vunpack.c.l.b16 %v322
    %v1005 = vunpack.c.h.b16 %v322
    %v1006 = vunpack.c.l.b16 %v323
    %v1007 = vunpack.c.h.b16 %v323
    %v1008 = vunpack.c.l.b16 %v324
    %v1009 = vunpack.c.h.b16 %v324
    %v1010 = vunpack.c.l.b16 %v325
    %v1011 = vunpack.c.h.b16 %v325
    %v1012 = vunpack.c.l.b16 %v326
    %v1013 = vunpack.c.h.b16 %v326
    %v1014 = vunpack.c.l.b16 %v327
    %v1015 = vunpack.c.h.b16 %v327
    %v1016 = vunpack.c.l.b16 %v328
    %v1017 = vunpack.c.h.b16 %v328
    %v1018 = vunpack.c.l.b16 %v329
    %v1019 = vunpack.c.h.b16 %v329
    %v1020 = vunpack.c.l.b16 %v330
    %v1021 = vunpack.c.h.b16 %v330
    %v1022 = vunpack.c.l.b16 %v331
    %v1023 = vunpack.c.h.b16 %v331
    %v1024 = vunpack.c.l.b16 %v332
    %v1025 = vunpack.c.h.b16 %v332
    %v1026 = vunpack.c.l.b16 %v333
    %v1027 = vunpack.c.h.b16 %v333
    %v1028 = vunpack.c.l.b16 %v334
    %v1029 = vunpack.c.h.b16 %v334
    %v1030 = vunpack.c.l.b16 %v335
    %v1031 = vunpack.c.h.b16 %v335
    %v1032 = vunpack.c.l.b16 %v336
    %v1033 = vunpack.c.h.b16 %v336
    %v1034 = vunpack.c.l.b16 %v337
    %v1035 = vunpack.c.h.b16 %v337
    %v1036 = vunpack.c.l.b16 %v338
    %v1037 = vunpack.c.h.b16 %v338
    %v1038 = vunpack.c.l.b16 %v339
    %v1039 = vunpack.c.h.b16 %v339
    %v1040 = vunpack.c.l.b16 %v340
    %v1041 = vunpack.c.h.b16 %v340
    %v1042 = vunpack.c.l.b16 %v341
    %v1043 = vunpack.c.h.b16 %v341
    %v1044 = vunpack.c.l.b16 %v342
    %v1045 = vunpack.c.h.b16 %v342
    %v1046 = vunpack.c.l.b16 %v343
    %v1047 = vunpack.c.h.b16 %v343
    %v1048 = vunpack.c.l.b16 %v344
    %v1049 = vunpack.c.h.b16 %v344
    %v1050 = vunpack.c.l.b16 %v345
    %v1051 = vunpack.c.h.b16 %v345
    %v1052 = vunpack.c.l.b16 %v346
    %v1053 = vunpack.c.h.b16 %v346
    %v1054 = vunpack.c.l.b16 %v347
    %v1055 = vunpack.c.h.b16 %v347
    %v1056 = vunpack.c.l.b16 %v348
    %v1057 = vunpack.c.h.b16 %v348
    %v1058 = vunpack.c.l.b16 %v349
    %v1059 = vunpack.c.h.b16 %v349
    %v1060 = vunpack.c.l.b16 %v350
    %v1061 = vunpack.c.h.b16 %v350
    %v1062 = vunpack.c.l.b16 %v351
    %v1063 = vunpack.c.h.b16 %v351
    %v1064 = vunpack.c.l.b16 %v352
    %v1065 = vunpack.c.h.b16 %v352
    %v1066 = vunpack.c.l.b16 %v353
    %v1067 = vunpack.c.h.b16 %v353
    %v1068 = vunpack.c.l.b16 %v354
    %v1069 = vunpack.c.h.b16 %v354
    %v1070 = vunpack.c.l.b16 %v355
    %v1071 = vunpack.c.h.b16 %v355
    %v1072 = vunpack.c.l.b16 %v356
    %v1073 = vunpack.c.h.b16 %v356
    %v1074 = vunpack.c.l.b16 %v357
    %v1075 = vunpack.c.h.b16 %v357
    %v1076 = vunpack.c.l.b16 %v358
    %v1077 = vunpack.c.h.b16 %v358
    %v1078 = vunpack.c.l.b16 %v359
    %v1079 = vunpack.c.h.b16 %v359
    %v1080 = vunpack.c.l.b16 %v360
    %v1081 = vunpack.c.h.b16 %v360
    %v1082 = vunpack.c.l.b16 %v361
    %v1083 = vunpack.c.h.b16 %v361
    %v1084 = vunpack.c.l.b16 %v362
    %v1085 = vunpack.c.h.b16 %v362
    %v1086 = vunpack.c.l.b16 %v363
    %v1087 = vunpack.c.h.b16 %v363
    %v1088 = vunpack.c.l.b16 %v364
    %v1089 = vunpack.c.h.b16 %v364
    %v1090 = vunpack.c.l.b16 %v365
    %v1091 = vunpack.c.h.b16 %v365
    %v1092 = vunpack.c.l.b16 %v366
    %v1093 = vunpack.c.h.b16 %v366
    %v1094 = vunpack.c.l.b16 %v367
    %v1095 = vunpack.c.h.b16 %v367
    %v1096 = vunpack.c.l.b16 %v368
    %v1097 = vunpack.c.h.b16 %v368
    %v1098 = vunpack.c.l.b16 %v369
    %v1099 = vunpack.c.h.b16 %v369
    %v1100 = vunpack.c.l.b16 %v370
    %v1101 = vunpack.c.h.b16 %v370
    %v1102 = vunpack.c.l.b16 %v371
    %v1103 = vunpack.c.h.b16 %v371
    %v1104 = vunpack.c.l.b16 %v372
    %v1105 = vunpack.c.h.b16 %v372
    %v1106 = vunpack.c.l.b16 %v373
    %v1107 = vunpack.c.h.b16 %v373
    %v1108 = vunpack.c.l.b16 %v374
    %v1109 = vunpack.c.h.b16 %v374
    %v1110 = vunpack.c.l.b16 %v375
    %v1111 = vunpack.c.h.b16 %v375
    %v1112 = vunpack.c.l.b16 %v376
    %v1113 = vunpack.c.h.b16 %v376
    %v1114 = vunpack.c.l.b16 %v377
    %v1115 = vunpack.c.h.b16 %v377
    %v1116 = vunpack.c.l.b16 %v378
    %v1117 = vunpack.c.h.b16 %v378
    %v1118 = vunpack.c.l.b16 %v379
    %v1119 = vunpack.c.h.b16 %v379
    %v1120 = vunpack.c.l.b16 %v380
    %v1121 = vunpack.c.h.b16 %v380
    %v1122 = vunpack.c.l.b16 %v381
    %v1123 = vunpack.c.h.b16 %v381
    %v1124 = vunpack.c.l.b16 %v382
    %v1125 = vunpack.c.h.b16 %v382
    %v1126 = vunpack.c.l.b16 %v383
    %v1127 = vunpack.c.h.b16 %v383
    %v1128 = vunpack.c.l.b16 %v384
    %v1129 = vunpack.c.h.b16 %v384
    %v1130 = vunpack.c.l.b16 %v385
    %v1131 = vunpack.c.h.b16 %v385
    %v1132 = vunpack.c.l.b16 %v386
    %v1133 = vunpack.c.h.b16 %v386
    %v1134 = vunpack.c.l.b16 %v387
    %v1135 = vunpack.c.h.b16 %v387
    %v1136 = vunpack.c.l.b16 %v388
    %v1137 = vunpack.c.h.b16 %v388
    %v1138 = vunpack.c.l.b16 %v389
    %v1139 = vunpack.c.h.b16 %v389
    %v1140 = vunpack.c.l.b16 %v390
    %v1141 = vunpack.c.h.b16 %v390
    %v1142 = vunpack.c.l.b16 %v391
    %v1143 = vunpack.c.h.b16 %v391
    %v1144 = vunpack.c.l.b16 %v392
    %v1145 = vunpack.c.h.b16 %v392
    %v1146 = vunpack.c.l.b16 %v393
    %v1147 = vunpack.c.h.b16 %v393
    %v1148 = vunpack.c.l.b16 %v394
    %v1149 = vunpack.c.h.b16 %v394
    %v1150 = vunpack.c.l.b16 %v395
    %v1151 = vunpack.c.h.b16 %v395
    %v1152 = vunpack.c.l.b16 %v396
    %v1153 = vunpack.c.h.b16 %v396
    %v1154 = vunpack.c.l.b16 %v397
    %v1155 = vunpack.c.h.b16 %v397
    %v1156 = vunpack.c.l.b16 %v398
    %v1157 = vunpack.c.h.b16 %v398
    %v1158 = vunpack.c.l.b16 %v399
    %v1159 = vunpack.c.h.b16 %v399
    %v1160 = vunpack.c.l.b16 %v400
    %v1161 = vunpack.c.h.b16 %v400
    %v1162 = vunpack.c.l.b16 %v401
    %v1163 = vunpack.c.h.b16 %v401
    %v1164 = vunpack.c.l.b16 %v402
    %v1165 = vunpack.c.h.b16 %v402
    %v1166 = vunpack.c.l.b16 %v403
    %v1167 = vunpack.c.h.b16 %v403
    %v1168 = vunpack.c.l.b16 %v404
    %v1169 = vunpack.c.h.b16 %v404
    %v1170 = vunpack.c.l.b16 %v405
    %v1171 = vunpack.c.h.b16 %v405
    %v1172 = vunpack.c.l.b16 %v406
    %v1173 = vunpack.c.h.b16 %v406
    %v1174 = vunpack.c.l.b16 %v407
    %v1175 = vunpack.c.h.b16 %v407
    %v1176 = vunpack.c.l.b16 %v408
    %v1177 = vunpack.c.h.b16 %v408
    %v1178 = vunpack.c.l.b16 %v409
    %v1179 = vunpack.c.h.b16 %v409
    %v1180 = vunpack.c.l.b16 %v410
    %v1181 = vunpack.c.h.b16 %v410
    %v1182 = vunpack.c.l.b16 %v411
    %v1183 = vunpack.c.h.b16 %v411
    %v1184 = vunpack.c.l.b16 %v412
    %v1185 = vunpack.c.h.b16 %v412
    %v1186 = vunpack.c.l.b16 %v413
    %v1187 = vunpack.c.h.b16 %v413
    %v1188 = vunpack.c.l.b16 %v414
    %v1189 = vunpack.c.h.b16 %v414
    %v1190 = vunpack.c.l.b16 %v415
    %v1191 = vunpack.c.h.b16 %v415
    %v1192 = vunpack.c.l.b16 %v416
    %v1193 = vunpack.c.h.b16 %v416
    %v1194 = vunpack.c.l.b16 %v417
    %v1195 = vunpack.c.h.b16 %v417
    %v1196 = vunpack.c.l.b16 %v418
    %v1197 = vunpack.c.h.b16 %v418
    %v1198 = vunpack.c.l.b16 %v419
    %v1199 = vunpack.c.h.b16 %v419
    %v1200 = vunpack.c.l.b16 %v420
    %v1201 = vunpack.c.h.b16 %v420
    %v1202 = vunpack.c.l.b16 %v421
    %v1203 = vunpack.c.h.b16 %v421
    %v1204 = vunpack.c.l.b16 %v422
    %v1205 = vunpack.c.h.b16 %v422
    %v1206 = vunpack.c.l.b16 %v423
    %v1207 = vunpack.c.h.b16 %v423
    %v1208 = vunpack.c.l.b16 %v424
    %v1209 = vunpack.c.h.b16 %v424
    %v1210 = vunpack.c.l.b16 %v425
    %v1211 = vunpack.c.h.b16 %v425
    %v1212 = vunpack.c.l.b16 %v426
    %v1213 = vunpack.c.h.b16 %v426
    %v1214 = vunpack.c.l.b16 %v427
    %v1215 = vunpack.c.h.b16 %v427
    %v1216 = vunpack.c.l.b16 %v428
    %v1217 = vunpack.c.h.b16 %v428
    %v1218 = vunpack.c.l.b16 %v429
    %v1219 = vunpack.c.h.b16 %v429
    %v1220 = vpack.c.b16 %v712, %v708
    %v1221 = vpack.c.b16 %v713, %v709
    %v1222 = vpack.c.b16 %v714, %v710
    %v1223 = vpack.c.b16 %v715, %v711
    %v1224 = vpack.c.b16 %v720, %v716
    %v1225 = vpack.c.b16 %v721, %v717
    %v1226 = vpack.c.b16 %v722, %v718
    %v1227 = vpack.c.b16 %v723, %v719
    %v1228 = vpack.c.b16 %v728, %v724
    %v1229 = vpack.c.b16 %v729, %v725
    %v1230 = vpack.c.b16 %v730, %v726
    %v1231 = vpack.c.b16 %v731, %v727
    %v1232 = vpack.c.b16 %v736, %v732
    %v1233 = vpack.c.b16 %v737, %v733
    %v1234 = vpack.c.b16 %v738, %v734
    %v1235 = vpack.c.b16 %v739, %v735
    %v1236 = vpack.c.b16 %v744, %v740
    %v1237 = vpack.c.b16 %v745, %v741
    %v1238 = vpack.c.b16 %v746, %v742
    %v1239 = vpack.c.b16 %v747, %v743
    %v1240 = vpack.c.b16 %v752, %v748
    %v1241 = vpack.c.b16 %v753, %v749
    %v1242 = vpack.c.b16 %v754, %v750
    %v1243 = vpack.c.b16 %v755, %v751
    %v1244 = vpack.c.b16 %v760, %v756
    %v1245 = vpack.c.b16 %v761, %v757
    %v1246 = vpack.c.b16 %v762, %v758
    %v1247 = vpack.c.b16 %v763, %v759
    %v1248 = vpack.c.b16 %v768, %v764
    %v1249 = vpack.c.b16 %v769, %v765
    %v1250 = vpack.c.b16 %v770, %v766
    %v1251 = vpack.c.b16 %v771, %v767
    %v1252 = vpack.c.b16 %v776, %v772
    %v1253 = vpack.c.b16 %v777, %v773
    %v1254 = vpack.c.b16 %v778, %v774
    %v1255 = vpack.c.b16 %v779, %v775
    %v1256 = vpack.c.b16 %v784, %v780
    %v1257 = vpack.c.b16 %v785, %v781
    %v1258 = vpack.c.b16 %v786, %v782
    %v1259 = vpack.c.b16 %v787, %v783
    %v1260 = vpack.c.b16 %v792, %v788
    %v1261 = vpack.c.b16 %v793, %v789
    %v1262 = vpack.c.b16 %v794, %v790
    %v1263 = vpack.c.b16 %v795, %v791
    %v1264 = vpack.c.b16 %v800, %v796
    %v1265 = vpack.c.b16 %v801, %v797
    %v1266 = vpack.c.b16 %v802, %v798
    %v1267 = vpack.c.b16 %v803, %v799
    %v1268 = vpack.c.b16 %v808, %v804
    %v1269 = vpack.c.b16 %v809, %v805
    %v1270 = vpack.c.b16 %v810, %v806
    %v1271 = vpack.c.b16 %v811, %v807
    %v1272 = vpack.c.b16 %v816, %v812
    %v1273 = vpack.c.b16 %v817, %v813
    %v1274 = vpack.c.b16 %v818, %v814
    %v1275 = vpack.c.b16 %v819, %v815
    %v1276 = vpack.c.b16 %v824, %v820
    %v1277 = vpack.c.b16 %v825, %v821
    %v1278 = vpack.c.b16 %v826, %v822
    %v1279 = vpack.c.b16 %v827, %v823
    %v1280 = vpack.c.b16 %v832, %v828
    %v1281 = vpack.c.b16 %v833, %v829
    %v1282 = vpack.c.b16 %v834, %v830
    %v1283 = vpack.c.b16 %v835, %v831
    %v1284 = vpack.c.b16 %v840, %v836
    %v1285 = vpack.c.b16 %v841, %v837
    %v1286 = vpack.c.b16 %v842, %v838
    %v1287 = vpack.c.b16 %v843, %v839
    %v1288 = vpack.c.b16 %v848, %v844
    %v1289 = vpack.c.b16 %v849, %v845
    %v1290 = vpack.c.b16 %v850, %v846
    %v1291 = vpack.c.b16 %v851, %v847
    %v1292 = vpack.c.b16 %v856, %v852
    %v1293 = vpack.c.b16 %v857, %v853
    %v1294 = vpack.c.b16 %v858, %v854
    %v1295 = vpack.c.b16 %v859, %v855
    %v1296 = vpack.c.b16 %v864, %v860
    %v1297 = vpack.c.b16 %v865, %v861
    %v1298 = vpack.c.b16 %v866, %v862
    %v1299 = vpack.c.b16 %v867, %v863
    %v1300 = vpack.c.b16 %v872, %v868
    %v1301 = vpack.c.b16 %v873, %v869
    %v1302 = vpack.c.b16 %v874, %v870
    %v1303 = vpack.c.b16 %v875, %v871
    %v1304 = vpack.c.b16 %v880, %v876
    %v1305 = vpack.c.b16 %v881, %v877
    %v1306 = vpack.c.b16 %v882, %v878
    %v1307 = vpack.c.b16 %v883, %v879
    %v1308 = vpack.c.b16 %v888, %v884
    %v1309 = vpack.c.b16 %v889, %v885
    %v1310 = vpack.c.b16 %v890, %v886
    %v1311 = vpack.c.b16 %v891, %v887
    %v1312 = vpack.c.b16 %v896, %v892
    %v1313 = vpack.c.b16 %v897, %v893
    %v1314 = vpack.c.b16 %v898, %v894
    %v1315 = vpack.c.b16 %v899, %v895
    %v1316 = vpack.c.b16 %v904, %v900
    %v1317 = vpack.c.b16 %v905, %v901
    %v1318 = vpack.c.b16 %v906, %v902
    %v1319 = vpack.c.b16 %v907, %v903
    %v1320 = vpack.c.b16 %v912, %v908
    %v1321 = vpack.c.b16 %v913, %v909
    %v1322 = vpack.c.b16 %v914, %v910
    %v1323 = vpack.c.b16 %v915, %v911
    %v1324 = vpack.c.b16 %v920, %v916
    %v1325 = vpack.c.b16 %v921, %v917
    %v1326 = vpack.c.b16 %v922, %v918
    %v1327 = vpack.c.b16 %v923, %v919
    %v1328 = vpack.c.b16 %v928, %v924
    %v1329 = vpack.c.b16 %v929, %v925
    %v1330 = vpack.c.b16 %v930, %v926
    %v1331 = vpack.c.b16 %v931, %v927
    %v1332 = vpack.c.b16 %v936, %v932
    %v1333 = vpack.c.b16 %v937, %v933
    %v1334 = vpack.c.b16 %v938, %v934
    %v1335 = vpack.c.b16 %v939, %v935
    %v1336 = vpack.c.b16 %v944, %v940
    %v1337 = vpack.c.b16 %v945, %v941
    %v1338 = vpack.c.b16 %v946, %v942
    %v1339 = vpack.c.b16 %v947, %v943
    %v1340 = vpack.c.b16 %v952, %v948
    %v1341 = vpack.c.b16 %v953, %v949
    %v1342 = vpack.c.b16 %v954, %v950
    %v1343 = vpack.c.b16 %v955, %v951
    %v1344 = vpack.c.b16 %v960, %v956
    %v1345 = vpack.c.b16 %v961, %v957
    %v1346 = vpack.c.b16 %v962, %v958
    %v1347 = vpack.c.b16 %v963, %v959
    %v1348 = vpack.c.b16 %v968, %v964
    %v1349 = vpack.c.b16 %v969, %v965
    %v1350 = vpack.c.b16 %v970, %v966
    %v1351 = vpack.c.b16 %v971, %v967
    %v1352 = vpack.c.b16 %v976, %v972
    %v1353 = vpack.c.b16 %v977, %v973
    %v1354 = vpack.c.b16 %v978, %v974
    %v1355 = vpack.c.b16 %v979, %v975
    %v1356 = vpack.c.b16 %v984, %v980
    %v1357 = vpack.c.b16 %v985, %v981
    %v1358 = vpack.c.b16 %v986, %v982
    %v1359 = vpack.c.b16 %v987, %v983
    %v1360 = vpack.c.b16 %v992, %v988
    %v1361 = vpack.c.b16 %v993, %v989
    %v1362 = vpack.c.b16 %v994, %v990
    %v1363 = vpack.c.b16 %v995, %v991
    %v1364 = vpack.c.b16 %v1000, %v996
    %v1365 = vpack.c.b16 %v1001, %v997
    %v1366 = vpack.c.b16 %v1002, %v998
    %v1367 = vpack.c.b16 %v1003, %v999
    %v1368 = vpack.c.b16 %v1008, %v1004
    %v1369 = vpack.c.b16 %v1009, %v1005
    %v1370 = vpack.c.b16 %v1010, %v1006
    %v1371 = vpack.c.b16 %v1011, %v1007
    %v1372 = vpack.c.b16 %v1016, %v1012
    %v1373 = vpack.c.b16 %v1017, %v1013
    %v1374 = vpack.c.b16 %v1018, %v1014
    %v1375 = vpack.c.b16 %v1019, %v1015
    %v1376 = vpack.c.b16 %v1024, %v1020
    %v1377 = vpack.c.b16 %v1025, %v1021
    %v1378 = vpack.c.b16 %v1026, %v1022
    %v1379 = vpack.c.b16 %v1027, %v1023
    %v1380 = vpack.c.b16 %v1032, %v1028
    %v1381 = vpack.c.b16 %v1033, %v1029
    %v1382 = vpack.c.b16 %v1034, %v1030
    %v1383 = vpack.c.b16 %v1035, %v1031
    %v1384 = vpack.c.b16 %v1040, %v1036
    %v1385 = vpack.c.b16 %v1041, %v1037
    %v1386 = vpack.c.b16 %v1042, %v1038
    %v1387 = vpack.c.b16 %v1043, %v1039
    %v1388 = vpack.c.b16 %v1048, %v1044
    %v1389 = vpack.c.b16 %v1049, %v1045
    %v1390 = vpack.c.b16 %v1050, %v1046
    %v1391 = vpack.c.b16 %v1051, %v1047
    %v1392 = vpack.c.b16 %v1056, %v1052
    %v1393 = vpack.c.b16 %v1057, %v1053
    %v1394 = vpack.c.b16 %v1058, %v1054
    %v1395 = vpack.c.b16 %v1059, %v1055
    %v1396 = vpack.c.b16 %v1064, %v1060
    %v1397 = vpack.c.b16 %v1065, %v1061
    %v1398 = vpack.c.b16 %v1066, %v1062
    %v1399 = vpack.c.b16 %v1067, %v1063
    %v1400 = vpack.c.b16 %v1072, %v1068
    %v1401 = vpack.c.b16 %v1073, %v1069
    %v1402 = vpack.c.b16 %v1074, %v1070
    %v1403 = vpack.c.b16 %v1075, %v1071
    %v1404 = vpack.c.b16 %v1080, %v1076
    %v1405 = vpack.c.b16 %v1081, %v1077
    %v1406 = vpack.c.b16 %v1082, %v1078
    %v1407 = vpack.c.b16 %v1083, %v1079
    %v1408 = vpack.c.b16 %v1088, %v1084
    %v1409 = vpack.c.b16 %v1089, %v1085
    %v1410 = vpack.c.b16 %v1090, %v1086
    %v1411 = vpack.c.b16 %v1091, %v1087
    %v1412 = vpack.c.b16 %v1096, %v1092
    %v1413 = vpack.c.b16 %v1097, %v1093
    %v1414 = vpack.c.b16 %v1098, %v1094
    %v1415 = vpack.c.b16 %v1099, %v1095
    %v1416 = vpack.c.b16 %v1104, %v1100
    %v1417 = vpack.c.b16 %v1105, %v1101
    %v1418 = vpack.c.b16 %v1106, %v1102
    %v1419 = vpack.c.b16 %v1107, %v1103
    %v1420 = vpack.c.b16 %v1112, %v1108
    %v1421 = vpack.c.b16 %v1113, %v1109
    %v1422 = vpack.c.b16 %v1114, %v1110
    %v1423 = vpack.c.b16 %v1115, %v1111
    %v1424 = vpack.c.b16 %v1120, %v1116
    %v1425 = vpack.c.b16 %v1121, %v1117
    %v1426 = vpack.c.b16 %v1122, %v1118
    %v1427 = vpack.c.b16 %v1123, %v1119
    %v1428 = vpack.c.b16 %v1128, %v1124
    %v1429 = vpack.c.b16 %v1129, %v1125
    %v1430 = vpack.c.b16 %v1130, %v1126
    %v1431 = vpack.c.b16 %v1131, %v1127
    %v1432 = vpack.c.b16 %v1136, %v1132
    %v1433 = vpack.c.b16 %v1137, %v1133
    %v1434 = vpack.c.b16 %v1138, %v1134
    %v1435 = vpack.c.b16 %v1139, %v1135
    %v1436 = vpack.c.b16 %v1144, %v1140
    %v1437 = vpack.c.b16 %v1145, %v1141
    %v1438 = vpack.c.b16 %v1146, %v1142
    %v1439 = vpack.c.b16 %v1147, %v1143
    %v1440 = vpack.c.b16 %v1152, %v1148
    %v1441 = vpack.c.b16 %v1153, %v1149
    %v1442 = vpack.c.b16 %v1154, %v1150
    %v1443 = vpack.c.b16 %v1155, %v1151
    %v1444 = vpack.c.b16 %v1160, %v1156
    %v1445 = vpack.c.b16 %v1161, %v1157
    %v1446 = vpack.c.b16 %v1162, %v1158
    %v1447 = vpack.c.b16 %v1163, %v1159
    %v1448 = vpack.c.b16 %v1168, %v1164
    %v1449 = vpack.c.b16 %v1169, %v1165
    %v1450 = vpack.c.b16 %v1170, %v1166
    %v1451 = vpack.c.b16 %v1171, %v1167
    %v1452 = vpack.c.b16 %v1176, %v1172
    %v1453 = vpack.c.b16 %v1177, %v1173
    %v1454 = vpack.c.b16 %v1178, %v1174
    %v1455 = vpack.c.b16 %v1179, %v1175
    %v1456 = vpack.c.b16 %v1184, %v1180
    %v1457 = vpack.c.b16 %v1185, %v1181
    %v1458 = vpack.c.b16 %v1186, %v1182
    %v1459 = vpack.c.b16 %v1187, %v1183
    %v1460 = vpack.c.b16 %v1192, %v1188
    %v1461 = vpack.c.b16 %v1193, %v1189
    %v1462 = vpack.c.b16 %v1194, %v1190
    %v1463 = vpack.c.b16 %v1195, %v1191
    %v1464 = vpack.c.b16 %v1200, %v1196
    %v1465 = vpack.c.b16 %v1201, %v1197
    %v1466 = vpack.c.b16 %v1202, %v1198
    %v1467 = vpack.c.b16 %v1203, %v1199
    %v1468 = vpack.c.b16 %v1208, %v1204
    %v1469 = vpack.c.b16 %v1209, %v1205
    %v1470 = vpack.c.b16 %v1210, %v1206
    %v1471 = vpack.c.b16 %v1211, %v1207
    %v1472 = vpack.c.b16 %v1216, %v1212
    %v1473 = vpack.c.b16 %v1217, %v1213
    %v1474 = vpack.c.b16 %v1218, %v1214
    %v1475 = vpack.c.b16 %v1219, %v1215
    %1732 = vmatprep.subr.bf16.mxu0 %v1221
    %1733 = vmatpush1.bf16.msra.mxu0 %v1220
    %1734 = vmatprep.subr.bf16.mxu0 %v1225
    %1735 = vmatpush1.bf16.msra.mxu0 %v1224
    %1736 = vmatprep.subr.bf16.mxu0 %v1229
    %1737 = vmatpush1.bf16.msra.mxu0 %v1228
    %1738 = vmatprep.subr.bf16.mxu0 %v1233
    %1739 = vmatpush1.bf16.msra.mxu0 %v1232
    %1740 = vmatprep.subr.bf16.mxu0 %v1237
    %1741 = vmatpush1.bf16.msra.mxu0 %v1236
    %1742 = vmatprep.subr.bf16.mxu0 %v1241
    %1743 = vmatpush1.bf16.msra.mxu0 %v1240
    %1744 = vmatprep.subr.bf16.mxu0 %v1245
    %1745 = vmatpush1.bf16.msra.mxu0 %v1244
    %1746 = vmatprep.subr.bf16.mxu0 %v1249
    %1747 = vmatpush1.bf16.msra.mxu0 %v1248
    %1748 = vmatprep.subr.bf16.mxu0 %v1253
    %1749 = vmatpush1.bf16.msra.mxu0 %v1252
    %1750 = vmatprep.subr.bf16.mxu0 %v1257
    %1751 = vmatpush1.bf16.msra.mxu0 %v1256
    %1752 = vmatprep.subr.bf16.mxu0 %v1261
    %1753 = vmatpush1.bf16.msra.mxu0 %v1260
    %1754 = vmatprep.subr.bf16.mxu0 %v1265
    %1755 = vmatpush1.bf16.msra.mxu0 %v1264
    %1756 = vmatprep.subr.bf16.mxu0 %v1269
    %1757 = vmatpush1.bf16.msra.mxu0 %v1268
    %1758 = vmatprep.subr.bf16.mxu0 %v1273
    %1759 = vmatpush1.bf16.msra.mxu0 %v1272
    %1760 = vmatprep.subr.bf16.mxu0 %v1277
    %1761 = vmatpush1.bf16.msra.mxu0 %v1276
    %1762 = vmatprep.subr.bf16.mxu0 %v1281
    %1763 = vmatpush1.bf16.msra.mxu0 %v1280
    %1764 = vmatprep.mubr.bf16.mxu0 %v167
    %1765 = vmatmul.mubr.bf16.gmra.mrb[0].mxu0 %v166
    %v1766 = vpop.f32.mrb[0].mxu0
    %v1767 = vadd.f32 %v435, %v1766
    %v1768 = vpop.f32.mrb[0].mxu0
    %v1769 = vadd.f32 %v439, %v1768
    %v1770 = vpop.f32.mrb[0].mxu0
    %v1771 = vpop.f32.mrb[0].mxu0
    %1772 = vdwg.mxu0
    %1773 = vmatprep.subr.bf16.mxu0 %v1285
    %1774 = vmatpush1.bf16.msra.mxu0 %v1284
    %1775 = vmatprep.subr.bf16.mxu0 %v1289
    %1776 = vmatpush1.bf16.msra.mxu0 %v1288
    %1777 = vmatprep.subr.bf16.mxu0 %v1293
    %1778 = vmatpush1.bf16.msra.mxu0 %v1292
    %1779 = vmatprep.subr.bf16.mxu0 %v1297
    %1780 = vmatpush1.bf16.msra.mxu0 %v1296
    %1781 = vmatprep.subr.bf16.mxu0 %v1301
    %1782 = vmatpush1.bf16.msra.mxu0 %v1300
    %1783 = vmatprep.subr.bf16.mxu0 %v1305
    %1784 = vmatpush1.bf16.msra.mxu0 %v1304
    %1785 = vmatprep.subr.bf16.mxu0 %v1309
    %1786 = vmatpush1.bf16.msra.mxu0 %v1308
    %1787 = vmatprep.subr.bf16.mxu0 %v1313
    %1788 = vmatpush1.bf16.msra.mxu0 %v1312
    %1789 = vmatprep.subr.bf16.mxu0 %v1317
    %1790 = vmatpush1.bf16.msra.mxu0 %v1316
    %1791 = vmatprep.subr.bf16.mxu0 %v1321
    %1792 = vmatpush1.bf16.msra.mxu0 %v1320
    %1793 = vmatprep.subr.bf16.mxu0 %v1325
    %1794 = vmatpush1.bf16.msra.mxu0 %v1324
    %1795 = vmatprep.subr.bf16.mxu0 %v1329
    %1796 = vmatpush1.bf16.msra.mxu0 %v1328
    %1797 = vmatprep.subr.bf16.mxu0 %v1333
    %1798 = vmatpush1.bf16.msra.mxu0 %v1332
    %1799 = vmatprep.subr.bf16.mxu0 %v1337
    %1800 = vmatpush1.bf16.msra.mxu0 %v1336
    %1801 = vmatprep.subr.bf16.mxu0 %v1341
    %1802 = vmatpush1.bf16.msra.mxu0 %v1340
    %1803 = vmatprep.subr.bf16.mxu0 %v1345
    %1804 = vmatpush1.bf16.msra.mxu0 %v1344
    %1805 = vmatprep.mubr.bf16.mxu0 %v169
    %1806 = vmatmul.mubr.bf16.gmra.mrb[0].mxu0 %v168
    %v1807 = vpop.f32.mrb[0].mxu0
    %v1808 = vadd.f32 %v1767, %v1807
    %v1809 = vpop.f32.mrb[0].mxu0
    %v1810 = vadd.f32 %v1769, %v1809
    %v1811 = vpop.f32.mrb[0].mxu0
    %v1812 = vpop.f32.mrb[0].mxu0
    %1813 = vdwg.mxu0
    %1814 = vmatprep.subr.bf16.mxu0 %v1349
    %1815 = vmatpush1.bf16.msra.mxu0 %v1348
    %1816 = vmatprep.subr.bf16.mxu0 %v1353
    %1817 = vmatpush1.bf16.msra.mxu0 %v1352
    %1818 = vmatprep.subr.bf16.mxu0 %v1357
    %1819 = vmatpush1.bf16.msra.mxu0 %v1356
    %1820 = vmatprep.subr.bf16.mxu0 %v1361
    %1821 = vmatpush1.bf16.msra.mxu0 %v1360
    %1822 = vmatprep.subr.bf16.mxu0 %v1365
    %1823 = vmatpush1.bf16.msra.mxu0 %v1364
    %1824 = vmatprep.subr.bf16.mxu0 %v1369
    %1825 = vmatpush1.bf16.msra.mxu0 %v1368
    %1826 = vmatprep.subr.bf16.mxu0 %v1373
    %1827 = vmatpush1.bf16.msra.mxu0 %v1372
    %1828 = vmatprep.subr.bf16.mxu0 %v1377
    %1829 = vmatpush1.bf16.msra.mxu0 %v1376
    %1830 = vmatprep.subr.bf16.mxu0 %v1381
    %1831 = vmatpush1.bf16.msra.mxu0 %v1380
    %1832 = vmatprep.subr.bf16.mxu0 %v1385
    %1833 = vmatpush1.bf16.msra.mxu0 %v1384
    %1834 = vmatprep.subr.bf16.mxu0 %v1389
    %1835 = vmatpush1.bf16.msra.mxu0 %v1388
    %1836 = vmatprep.subr.bf16.mxu0 %v1393
    %1837 = vmatpush1.bf16.msra.mxu0 %v1392
    %1838 = vmatprep.subr.bf16.mxu0 %v1397
    %1839 = vmatpush1.bf16.msra.mxu0 %v1396
    %1840 = vmatprep.subr.bf16.mxu0 %v1401
    %1841 = vmatpush1.bf16.msra.mxu0 %v1400
    %1842 = vmatprep.subr.bf16.mxu0 %v1405
    %1843 = vmatpush1.bf16.msra.mxu0 %v1404
    %1844 = vmatprep.subr.bf16.mxu0 %v1409
    %1845 = vmatpush1.bf16.msra.mxu0 %v1408
    %1846 = vmatprep.mubr.bf16.mxu0 %v171
    %1847 = vmatmul.mubr.bf16.gmra.mrb[0].mxu0 %v170
    %v1848 = vpop.f32.mrb[0].mxu0
    %v1849 = vadd.f32 %v1808, %v1848
    %v1850 = vpop.f32.mrb[0].mxu0
    %v1851 = vadd.f32 %v1810, %v1850
    %v1852 = vpop.f32.mrb[0].mxu0
    %v1853 = vpop.f32.mrb[0].mxu0
    %1854 = vdwg.mxu0
    %1855 = vmatprep.subr.bf16.mxu0 %v1413
    %1856 = vmatpush1.bf16.msra.mxu0 %v1412
    %1857 = vmatprep.subr.bf16.mxu0 %v1417
    %1858 = vmatpush1.bf16.msra.mxu0 %v1416
    %1859 = vmatprep.subr.bf16.mxu0 %v1421
    %1860 = vmatpush1.bf16.msra.mxu0 %v1420
    %1861 = vmatprep.subr.bf16.mxu0 %v1425
    %1862 = vmatpush1.bf16.msra.mxu0 %v1424
    %1863 = vmatprep.subr.bf16.mxu0 %v1429
    %1864 = vmatpush1.bf16.msra.mxu0 %v1428
    %1865 = vmatprep.subr.bf16.mxu0 %v1433
    %1866 = vmatpush1.bf16.msra.mxu0 %v1432
    %1867 = vmatprep.subr.bf16.mxu0 %v1437
    %1868 = vmatpush1.bf16.msra.mxu0 %v1436
    %1869 = vmatprep.subr.bf16.mxu0 %v1441
    %1870 = vmatpush1.bf16.msra.mxu0 %v1440
    %1871 = vmatprep.subr.bf16.mxu0 %v1445
    %1872 = vmatpush1.bf16.msra.mxu0 %v1444
    %1873 = vmatprep.subr.bf16.mxu0 %v1449
    %1874 = vmatpush1.bf16.msra.mxu0 %v1448
    %1875 = vmatprep.subr.bf16.mxu0 %v1453
    %1876 = vmatpush1.bf16.msra.mxu0 %v1452
    %1877 = vmatprep.subr.bf16.mxu0 %v1457
    %1878 = vmatpush1.bf16.msra.mxu0 %v1456
    %1879 = vmatprep.subr.bf16.mxu0 %v1461
    %1880 = vmatpush1.bf16.msra.mxu0 %v1460
    %1881 = vmatprep.subr.bf16.mxu0 %v1465
    %1882 = vmatpush1.bf16.msra.mxu0 %v1464
    %1883 = vmatprep.subr.bf16.mxu0 %v1469
    %1884 = vmatpush1.bf16.msra.mxu0 %v1468
    %1885 = vmatprep.subr.bf16.mxu0 %v1473
    %1886 = vmatpush1.bf16.msra.mxu0 %v1472
    %1887 = vmatprep.mubr.bf16.mxu0 %v173
    %1888 = vmatmul.mubr.bf16.gmra.mrb[0].mxu0 %v172
    %v1889 = vpop.f32.mrb[0].mxu0
    %v1890 = vadd.f32 %v1849, %v1889
    %v1891 = vpop.f32.mrb[0].mxu0
    %v1892 = vadd.f32 %v1851, %v1891
    %v1893 = vpop.f32.mrb[0].mxu0
    %v1894 = vpop.f32.mrb[0].mxu0
    %1895 = vdwg.mxu0
    %1896 = vmatprep.subr.bf16.mxu0 %v1223
    %1897 = vmatpush1.bf16.msra.mxu0 %v1222
    %1898 = vmatprep.subr.bf16.mxu0 %v1227
    %1899 = vmatpush1.bf16.msra.mxu0 %v1226
    %1900 = vmatprep.subr.bf16.mxu0 %v1231
    %1901 = vmatpush1.bf16.msra.mxu0 %v1230
    %1902 = vmatprep.subr.bf16.mxu0 %v1235
    %1903 = vmatpush1.bf16.msra.mxu0 %v1234
    %1904 = vmatprep.subr.bf16.mxu0 %v1239
    %1905 = vmatpush1.bf16.msra.mxu0 %v1238
    %1906 = vmatprep.subr.bf16.mxu0 %v1243
    %1907 = vmatpush1.bf16.msra.mxu0 %v1242
    %1908 = vmatprep.subr.bf16.mxu0 %v1247
    %1909 = vmatpush1.bf16.msra.mxu0 %v1246
    %1910 = vmatprep.subr.bf16.mxu0 %v1251
    %1911 = vmatpush1.bf16.msra.mxu0 %v1250
    %1912 = vmatprep.subr.bf16.mxu0 %v1255
    %1913 = vmatpush1.bf16.msra.mxu0 %v1254
    %1914 = vmatprep.subr.bf16.mxu0 %v1259
    %1915 = vmatpush1.bf16.msra.mxu0 %v1258
    %1916 = vmatprep.subr.bf16.mxu0 %v1263
    %1917 = vmatpush1.bf16.msra.mxu0 %v1262
    %1918 = vmatprep.subr.bf16.mxu0 %v1267
    %1919 = vmatpush1.bf16.msra.mxu0 %v1266
    %1920 = vmatprep.subr.bf16.mxu0 %v1271
    %1921 = vmatpush1.bf16.msra.mxu0 %v1270
    %1922 = vmatprep.subr.bf16.mxu0 %v1275
    %1923 = vmatpush1.bf16.msra.mxu0 %v1274
    %1924 = vmatprep.subr.bf16.mxu0 %v1279
    %1925 = vmatpush1.bf16.msra.mxu0 %v1278
    %1926 = vmatprep.subr.bf16.mxu0 %v1283
    %1927 = vmatpush1.bf16.msra.mxu0 %v1282
    %1928 = vmatprep.mubr.bf16.mxu0 %v167
    %1929 = vmatmul.mubr.bf16.gmra.mrb[0].mxu0 %v166
    %v1930 = vpop.f32.mrb[0].mxu0
    %v1931 = vadd.f32 %v443, %v1930
    %v1932 = vpop.f32.mrb[0].mxu0
    %v1933 = vadd.f32 %v447, %v1932
    %v1934 = vpop.f32.mrb[0].mxu0
    %v1935 = vpop.f32.mrb[0].mxu0
    %1936 = vdwg.mxu0
    %1937 = vmatprep.subr.bf16.mxu0 %v1287
    %1938 = vmatpush1.bf16.msra.mxu0 %v1286
    %1939 = vmatprep.subr.bf16.mxu0 %v1291
    %1940 = vmatpush1.bf16.msra.mxu0 %v1290
    %1941 = vmatprep.subr.bf16.mxu0 %v1295
    %1942 = vmatpush1.bf16.msra.mxu0 %v1294
    %1943 = vmatprep.subr.bf16.mxu0 %v1299
    %1944 = vmatpush1.bf16.msra.mxu0 %v1298
    %1945 = vmatprep.subr.bf16.mxu0 %v1303
    %1946 = vmatpush1.bf16.msra.mxu0 %v1302
    %1947 = vmatprep.subr.bf16.mxu0 %v1307
    %1948 = vmatpush1.bf16.msra.mxu0 %v1306
    %1949 = vmatprep.subr.bf16.mxu0 %v1311
    %1950 = vmatpush1.bf16.msra.mxu0 %v1310
    %1951 = vmatprep.subr.bf16.mxu0 %v1315
    %1952 = vmatpush1.bf16.msra.mxu0 %v1314
    %1953 = vmatprep.subr.bf16.mxu0 %v1319
    %1954 = vmatpush1.bf16.msra.mxu0 %v1318
    %1955 = vmatprep.subr.bf16.mxu0 %v1323
    %1956 = vmatpush1.bf16.msra.mxu0 %v1322
    %1957 = vmatprep.subr.bf16.mxu0 %v1327
    %1958 = vmatpush1.bf16.msra.mxu0 %v1326
    %1959 = vmatprep.subr.bf16.mxu0 %v1331
    %1960 = vmatpush1.bf16.msra.mxu0 %v1330
    %1961 = vmatprep.subr.bf16.mxu0 %v1335
    %1962 = vmatpush1.bf16.msra.mxu0 %v1334
    %1963 = vmatprep.subr.bf16.mxu0 %v1339
    %1964 = vmatpush1.bf16.msra.mxu0 %v1338
    %1965 = vmatprep.subr.bf16.mxu0 %v1343
    %1966 = vmatpush1.bf16.msra.mxu0 %v1342
    %1967 = vmatprep.subr.bf16.mxu0 %v1347
    %1968 = vmatpush1.bf16.msra.mxu0 %v1346
    %1969 = vmatprep.mubr.bf16.mxu0 %v169
    %1970 = vmatmul.mubr.bf16.gmra.mrb[0].mxu0 %v168
    %v1971 = vpop.f32.mrb[0].mxu0
    %v1972 = vadd.f32 %v1931, %v1971
    %v1973 = vpop.f32.mrb[0].mxu0
    %v1974 = vadd.f32 %v1933, %v1973
    %v1975 = vpop.f32.mrb[0].mxu0
    %v1976 = vpop.f32.mrb[0].mxu0
    %1977 = vdwg.mxu0
    %1978 = vmatprep.subr.bf16.mxu0 %v1351
    %1979 = vmatpush1.bf16.msra.mxu0 %v1350
    %1980 = vmatprep.subr.bf16.mxu0 %v1355
    %1981 = vmatpush1.bf16.msra.mxu0 %v1354
    %1982 = vmatprep.subr.bf16.mxu0 %v1359
    %1983 = vmatpush1.bf16.msra.mxu0 %v1358
    %1984 = vmatprep.subr.bf16.mxu0 %v1363
    %1985 = vmatpush1.bf16.msra.mxu0 %v1362
    %1986 = vmatprep.subr.bf16.mxu0 %v1367
    %1987 = vmatpush1.bf16.msra.mxu0 %v1366
    %1988 = vmatprep.subr.bf16.mxu0 %v1371
    %1989 = vmatpush1.bf16.msra.mxu0 %v1370
    %1990 = vmatprep.subr.bf16.mxu0 %v1375
    %1991 = vmatpush1.bf16.msra.mxu0 %v1374
    %1992 = vmatprep.subr.bf16.mxu0 %v1379
    %1993 = vmatpush1.bf16.msra.mxu0 %v1378
    %1994 = vmatprep.subr.bf16.mxu0 %v1383
    %1995 = vmatpush1.bf16.msra.mxu0 %v1382
    %1996 = vmatprep.subr.bf16.mxu0 %v1387
    %1997 = vmatpush1.bf16.msra.mxu0 %v1386
    %1998 = vmatprep.subr.bf16.mxu0 %v1391
    %1999 = vmatpush1.bf16.msra.mxu0 %v1390
    %2000 = vmatprep.subr.bf16.mxu0 %v1395
    %2001 = vmatpush1.bf16.msra.mxu0 %v1394
    %2002 = vmatprep.subr.bf16.mxu0 %v1399
    %2003 = vmatpush1.bf16.msra.mxu0 %v1398
    %2004 = vmatprep.subr.bf16.mxu0 %v1403
    %2005 = vmatpush1.bf16.msra.mxu0 %v1402
    %2006 = vmatprep.subr.bf16.mxu0 %v1407
    %2007 = vmatpush1.bf16.msra.mxu0 %v1406
    %2008 = vmatprep.subr.bf16.mxu0 %v1411
    %2009 = vmatpush1.bf16.msra.mxu0 %v1410
    %2010 = vmatprep.mubr.bf16.mxu0 %v171
    %2011 = vmatmul.mubr.bf16.gmra.mrb[0].mxu0 %v170
    %v2012 = vpop.f32.mrb[0].mxu0
    %v2013 = vadd.f32 %v1972, %v2012
    %v2014 = vpop.f32.mrb[0].mxu0
    %v2015 = vadd.f32 %v1974, %v2014
    %v2016 = vpop.f32.mrb[0].mxu0
    %v2017 = vpop.f32.mrb[0].mxu0
    %2018 = vdwg.mxu0
    %2019 = vmatprep.subr.bf16.mxu0 %v1415
    %2020 = vmatpush1.bf16.msra.mxu0 %v1414
    %2021 = vmatprep.subr.bf16.mxu0 %v1419
    %2022 = vmatpush1.bf16.msra.mxu0 %v1418
    %2023 = vmatprep.subr.bf16.mxu0 %v1423
    %2024 = vmatpush1.bf16.msra.mxu0 %v1422
    %2025 = vmatprep.subr.bf16.mxu0 %v1427
    %2026 = vmatpush1.bf16.msra.mxu0 %v1426
    %2027 = vmatprep.subr.bf16.mxu0 %v1431
    %2028 = vmatpush1.bf16.msra.mxu0 %v1430
    %2029 = vmatprep.subr.bf16.mxu0 %v1435
    %2030 = vmatpush1.bf16.msra.mxu0 %v1434
    %2031 = vmatprep.subr.bf16.mxu0 %v1439
    %2032 = vmatpush1.bf16.msra.mxu0 %v1438
    %2033 = vmatprep.subr.bf16.mxu0 %v1443
    %2034 = vmatpush1.bf16.msra.mxu0 %v1442
    %2035 = vmatprep.subr.bf16.mxu0 %v1447
    %2036 = vmatpush1.bf16.msra.mxu0 %v1446
    %2037 = vmatprep.subr.bf16.mxu0 %v1451
    %2038 = vmatpush1.bf16.msra.mxu0 %v1450
    %2039 = vmatprep.subr.bf16.mxu0 %v1455
    %2040 = vmatpush1.bf16.msra.mxu0 %v1454
    %2041 = vmatprep.subr.bf16.mxu0 %v1459
    %2042 = vmatpush1.bf16.msra.mxu0 %v1458
    %2043 = vmatprep.subr.bf16.mxu0 %v1463
    %2044 = vmatpush1.bf16.msra.mxu0 %v1462
    %2045 = vmatprep.subr.bf16.mxu0 %v1467
    %2046 = vmatpush1.bf16.msra.mxu0 %v1466
    %2047 = vmatprep.subr.bf16.mxu0 %v1471
    %2048 = vmatpush1.bf16.msra.mxu0 %v1470
    %2049 = vmatprep.subr.bf16.mxu0 %v1475
    %2050 = vmatpush1.bf16.msra.mxu0 %v1474
    %2051 = vmatprep.mubr.bf16.mxu0 %v173
    %2052 = vmatmul.mubr.bf16.gmra.mrb[0].mxu0 %v172
    %v2053 = vpop.f32.mrb[0].mxu0
    %v2054 = vadd.f32 %v2013, %v2053
    %v2055 = vpop.f32.mrb[0].mxu0
    %v2056 = vadd.f32 %v2015, %v2055
    %v2057 = vpop.f32.mrb[0].mxu0
    %v2058 = vpop.f32.mrb[0].mxu0
    %2059 = vdwg.mxu0
    %v2060 = vmul.f32 %v1890, 0.2
    %v2061 = vmul.f32 %v1892, 0.2
    %v2062 = vmul.f32 %v2054, 0.2
    %v2063 = vmul.f32 %v2056, 0.2
    %v2064 = vmax.f32 %v1890, %v2060
    %v2065 = vmax.f32 %v1892, %v2061
    %v2066 = vmax.f32 %v2054, %v2062
    %v2067 = vmax.f32 %v2056, %v2063
    %v2068 = vpack.c.bf16 %v2064, %v2064
    %v2069 = vpack.c.bf16 %v2065, %v2065
    %v2070 = vpack.c.bf16 %v2066, %v2066
    %v2071 = vpack.c.bf16 %v2067, %v2067
    %v2072 = vld [vmem:[#allocation8] sm:$0xff]
    %v2073 = vld [vmem:[#allocation8 + $0x8] sm:$0xff]
    %v2074 = vld [vmem:[#allocation8 + $0x10] sm:$0xff]
    %v2075 = vld [vmem:[#allocation8 + $0x18] sm:$0xff]
    %v2076 = vld [vmem:[#allocation8 + $0x20] sm:$0xff]
    %v2077 = vld [vmem:[#allocation8 + $0x28] sm:$0xff]
    %v2078 = vld [vmem:[#allocation8 + $0x30] sm:$0xff]
    %v2079 = vld [vmem:[#allocation8 + $0x38] sm:$0xff]
    %v2080 = vld [vmem:[#allocation8 + $0x40] sm:$0xff]
    %v2081 = vld [vmem:[#allocation8 + $0x48] sm:$0xff]
    %v2082 = vld [vmem:[#allocation8 + $0x50] sm:$0xff]
    %v2083 = vld [vmem:[#allocation8 + $0x58] sm:$0xff]
    %v2084 = vld [vmem:[#allocation8 + $0x60] sm:$0xff]
    %v2085 = vld [vmem:[#allocation8 + $0x68] sm:$0xff]
    %v2086 = vld [vmem:[#allocation8 + $0x70] sm:$0xff]
    %v2087 = vld [vmem:[#allocation8 + $0x78] sm:$0xff]
    %v2088 = vld [vmem:[#allocation8 + $0x80] sm:$0xff]
    %v2089 = vld [vmem:[#allocation8 + $0x88] sm:$0xff]
    %v2090 = vld [vmem:[#allocation8 + $0x90] sm:$0xff]
    %v2091 = vld [vmem:[#allocation8 + $0x98] sm:$0xff]
    %v2092 = vld [vmem:[#allocation8 + $0xa0] sm:$0xff]
    %v2093 = vld [vmem:[#allocation8 + $0xa8] sm:$0xff]
    %v2094 = vld [vmem:[#allocation8 + $0xb0] sm:$0xff]
    %v2095 = vld [vmem:[#allocation8 + $0xb8] sm:$0xff]
    %v2096 = vld [vmem:[#allocation8 + $0xc0] sm:$0xff]
    %v2097 = vld [vmem:[#allocation8 + $0xc8] sm:$0xff]
    %v2098 = vld [vmem:[#allocation8 + $0xd0] sm:$0xff]
    %v2099 = vld [vmem:[#allocation8 + $0xd8] sm:$0xff]
    %v2100 = vld [vmem:[#allocation8 + $0xe0] sm:$0xff]
    %v2101 = vld [vmem:[#allocation8 + $0xe8] sm:$0xff]
    %v2102 = vld [vmem:[#allocation8 + $0xf0] sm:$0xff]
    %v2103 = vld [vmem:[#allocation8 + $0xf8] sm:$0xff]
    %v2104 = vld [vmem:[#allocation8 + $0x100] sm:$0xff]
    %v2105 = vld [vmem:[#allocation8 + $0x108] sm:$0xff]
    %v2106 = vld [vmem:[#allocation8 + $0x110] sm:$0xff]
    %v2107 = vld [vmem:[#allocation8 + $0x118] sm:$0xff]
    %v2108 = vld [vmem:[#allocation8 + $0x120] sm:$0xff]
    %v2109 = vld [vmem:[#allocation8 + $0x128] sm:$0xff]
    %v2110 = vld [vmem:[#allocation8 + $0x130] sm:$0xff]
    %v2111 = vld [vmem:[#allocation8 + $0x138] sm:$0xff]
    %v2112 = vld [vmem:[#allocation8 + $0x140] sm:$0xff]
    %v2113 = vld [vmem:[#allocation8 + $0x148] sm:$0xff]
    %v2114 = vld [vmem:[#allocation8 + $0x150] sm:$0xff]
    %v2115 = vld [vmem:[#allocation8 + $0x158] sm:$0xff]
    %v2116 = vld [vmem:[#allocation8 + $0x160] sm:$0xff]
    %v2117 = vld [vmem:[#allocation8 + $0x168] sm:$0xff]
    %v2118 = vld [vmem:[#allocation8 + $0x170] sm:$0xff]
    %v2119 = vld [vmem:[#allocation8 + $0x178] sm:$0xff]
    %v2120 = vld [vmem:[#allocation8 + $0x180] sm:$0xff]
    %v2121 = vld [vmem:[#allocation8 + $0x188] sm:$0xff]
    %v2122 = vld [vmem:[#allocation8 + $0x190] sm:$0xff]
    %v2123 = vld [vmem:[#allocation8 + $0x198] sm:$0xff]
    %v2124 = vld [vmem:[#allocation8 + $0x1a0] sm:$0xff]
    %v2125 = vld [vmem:[#allocation8 + $0x1a8] sm:$0xff]
    %v2126 = vld [vmem:[#allocation8 + $0x1b0] sm:$0xff]
    %v2127 = vld [vmem:[#allocation8 + $0x1b8] sm:$0xff]
    %v2128 = vld [vmem:[#allocation8 + $0x1c0] sm:$0xff]
    %v2129 = vld [vmem:[#allocation8 + $0x1c8] sm:$0xff]
    %v2130 = vld [vmem:[#allocation8 + $0x1d0] sm:$0xff]
    %v2131 = vld [vmem:[#allocation8 + $0x1d8] sm:$0xff]
    %v2132 = vld [vmem:[#allocation8 + $0x1e0] sm:$0xff]
    %v2133 = vld [vmem:[#allocation8 + $0x1e8] sm:$0xff]
    %v2134 = vld [vmem:[#allocation8 + $0x1f0] sm:$0xff]
    %v2135 = vld [vmem:[#allocation8 + $0x1f8] sm:$0xff]
    %v2136 = vld [vmem:[%s4] sm:$0x3]
    %v2138 = vlaneseq
    %v2139 = vshrl.u32 %v2138, 7
    %v2140 = vsub.s32 0, %v2139
    %v2141 = vrot.slane %v2136, %v2140
    %v2142 = vlaneseq
    %v2143 = vshrl.u32 %v2142, 7
    %v2144 = vsub.s32 1, %v2143
    %v2145 = vrot.slane %v2136, %v2144
    %v2212 = vunpack.c.l.b16 %v2072
    %v2213 = vunpack.c.h.b16 %v2072
    %v2214 = vunpack.c.l.b16 %v2073
    %v2215 = vunpack.c.h.b16 %v2073
    %v2216 = vunpack.c.l.b16 %v2074
    %v2217 = vunpack.c.h.b16 %v2074
    %v2218 = vunpack.c.l.b16 %v2075
    %v2219 = vunpack.c.h.b16 %v2075
    %v2220 = vunpack.c.l.b16 %v2076
    %v2221 = vunpack.c.h.b16 %v2076
    %v2222 = vunpack.c.l.b16 %v2077
    %v2223 = vunpack.c.h.b16 %v2077
    %v2224 = vunpack.c.l.b16 %v2078
    %v2225 = vunpack.c.h.b16 %v2078
    %v2226 = vunpack.c.l.b16 %v2079
    %v2227 = vunpack.c.h.b16 %v2079
    %v2228 = vunpack.c.l.b16 %v2080
    %v2229 = vunpack.c.h.b16 %v2080
    %v2230 = vunpack.c.l.b16 %v2081
    %v2231 = vunpack.c.h.b16 %v2081
    %v2232 = vunpack.c.l.b16 %v2082
    %v2233 = vunpack.c.h.b16 %v2082
    %v2234 = vunpack.c.l.b16 %v2083
    %v2235 = vunpack.c.h.b16 %v2083
    %v2236 = vunpack.c.l.b16 %v2084
    %v2237 = vunpack.c.h.b16 %v2084
    %v2238 = vunpack.c.l.b16 %v2085
    %v2239 = vunpack.c.h.b16 %v2085
    %v2240 = vunpack.c.l.b16 %v2086
    %v2241 = vunpack.c.h.b16 %v2086
    %v2242 = vunpack.c.l.b16 %v2087
    %v2243 = vunpack.c.h.b16 %v2087
    %v2244 = vunpack.c.l.b16 %v2088
    %v2245 = vunpack.c.h.b16 %v2088
    %v2246 = vunpack.c.l.b16 %v2089
    %v2247 = vunpack.c.h.b16 %v2089
    %v2248 = vunpack.c.l.b16 %v2090
    %v2249 = vunpack.c.h.b16 %v2090
    %v2250 = vunpack.c.l.b16 %v2091
    %v2251 = vunpack.c.h.b16 %v2091
    %v2252 = vunpack.c.l.b16 %v2092
    %v2253 = vunpack.c.h.b16 %v2092
    %v2254 = vunpack.c.l.b16 %v2093
    %v2255 = vunpack.c.h.b16 %v2093
    %v2256 = vunpack.c.l.b16 %v2094
    %v2257 = vunpack.c.h.b16 %v2094
    %v2258 = vunpack.c.l.b16 %v2095
    %v2259 = vunpack.c.h.b16 %v2095
    %v2260 = vunpack.c.l.b16 %v2096
    %v2261 = vunpack.c.h.b16 %v2096
    %v2262 = vunpack.c.l.b16 %v2097
    %v2263 = vunpack.c.h.b16 %v2097
    %v2264 = vunpack.c.l.b16 %v2098
    %v2265 = vunpack.c.h.b16 %v2098
    %v2266 = vunpack.c.l.b16 %v2099
    %v2267 = vunpack.c.h.b16 %v2099
    %v2268 = vunpack.c.l.b16 %v2100
    %v2269 = vunpack.c.h.b16 %v2100
    %v2270 = vunpack.c.l.b16 %v2101
    %v2271 = vunpack.c.h.b16 %v2101
    %v2272 = vunpack.c.l.b16 %v2102
    %v2273 = vunpack.c.h.b16 %v2102
    %v2274 = vunpack.c.l.b16 %v2103
    %v2275 = vunpack.c.h.b16 %v2103
    %v2276 = vunpack.c.l.b16 %v2104
    %v2277 = vunpack.c.h.b16 %v2104
    %v2278 = vunpack.c.l.b16 %v2105
    %v2279 = vunpack.c.h.b16 %v2105
    %v2280 = vunpack.c.l.b16 %v2106
    %v2281 = vunpack.c.h.b16 %v2106
    %v2282 = vunpack.c.l.b16 %v2107
    %v2283 = vunpack.c.h.b16 %v2107
    %v2284 = vunpack.c.l.b16 %v2108
    %v2285 = vunpack.c.h.b16 %v2108
    %v2286 = vunpack.c.l.b16 %v2109
    %v2287 = vunpack.c.h.b16 %v2109
    %v2288 = vunpack.c.l.b16 %v2110
    %v2289 = vunpack.c.h.b16 %v2110
    %v2290 = vunpack.c.l.b16 %v2111
    %v2291 = vunpack.c.h.b16 %v2111
    %v2292 = vunpack.c.l.b16 %v2112
    %v2293 = vunpack.c.h.b16 %v2112
    %v2294 = vunpack.c.l.b16 %v2113
    %v2295 = vunpack.c.h.b16 %v2113
    %v2296 = vunpack.c.l.b16 %v2114
    %v2297 = vunpack.c.h.b16 %v2114
    %v2298 = vunpack.c.l.b16 %v2115
    %v2299 = vunpack.c.h.b16 %v2115
    %v2300 = vunpack.c.l.b16 %v2116
    %v2301 = vunpack.c.h.b16 %v2116
    %v2302 = vunpack.c.l.b16 %v2117
    %v2303 = vunpack.c.h.b16 %v2117
    %v2304 = vunpack.c.l.b16 %v2118
    %v2305 = vunpack.c.h.b16 %v2118
    %v2306 = vunpack.c.l.b16 %v2119
    %v2307 = vunpack.c.h.b16 %v2119
    %v2308 = vunpack.c.l.b16 %v2120
    %v2309 = vunpack.c.h.b16 %v2120
    %v2310 = vunpack.c.l.b16 %v2121
    %v2311 = vunpack.c.h.b16 %v2121
    %v2312 = vunpack.c.l.b16 %v2122
    %v2313 = vunpack.c.h.b16 %v2122
    %v2314 = vunpack.c.l.b16 %v2123
    %v2315 = vunpack.c.h.b16 %v2123
    %v2316 = vunpack.c.l.b16 %v2124
    %v2317 = vunpack.c.h.b16 %v2124
    %v2318 = vunpack.c.l.b16 %v2125
    %v2319 = vunpack.c.h.b16 %v2125
    %v2320 = vunpack.c.l.b16 %v2126
    %v2321 = vunpack.c.h.b16 %v2126
    %v2322 = vunpack.c.l.b16 %v2127
    %v2323 = vunpack.c.h.b16 %v2127
    %v2324 = vunpack.c.l.b16 %v2128
    %v2325 = vunpack.c.h.b16 %v2128
    %v2326 = vunpack.c.l.b16 %v2129
    %v2327 = vunpack.c.h.b16 %v2129
    %v2328 = vunpack.c.l.b16 %v2130
    %v2329 = vunpack.c.h.b16 %v2130
    %v2330 = vunpack.c.l.b16 %v2131
    %v2331 = vunpack.c.h.b16 %v2131
    %v2332 = vunpack.c.l.b16 %v2132
    %v2333 = vunpack.c.h.b16 %v2132
    %v2334 = vunpack.c.l.b16 %v2133
    %v2335 = vunpack.c.h.b16 %v2133
    %v2336 = vunpack.c.l.b16 %v2134
    %v2337 = vunpack.c.h.b16 %v2134
    %v2338 = vunpack.c.l.b16 %v2135
    %v2339 = vunpack.c.h.b16 %v2135
    %v2340 = vpack.c.b16 %v2214, %v2212
    %v2341 = vpack.c.b16 %v2215, %v2213
    %v2342 = vpack.c.b16 %v2218, %v2216
    %v2343 = vpack.c.b16 %v2219, %v2217
    %v2344 = vpack.c.b16 %v2222, %v2220
    %v2345 = vpack.c.b16 %v2223, %v2221
    %v2346 = vpack.c.b16 %v2226, %v2224
    %v2347 = vpack.c.b16 %v2227, %v2225
    %v2348 = vpack.c.b16 %v2230, %v2228
    %v2349 = vpack.c.b16 %v2231, %v2229
    %v2350 = vpack.c.b16 %v2234, %v2232
    %v2351 = vpack.c.b16 %v2235, %v2233
    %v2352 = vpack.c.b16 %v2238, %v2236
    %v2353 = vpack.c.b16 %v2239, %v2237
    %v2354 = vpack.c.b16 %v2242, %v2240
    %v2355 = vpack.c.b16 %v2243, %v2241
    %v2356 = vpack.c.b16 %v2246, %v2244
    %v2357 = vpack.c.b16 %v2247, %v2245
    %v2358 = vpack.c.b16 %v2250, %v2248
    %v2359 = vpack.c.b16 %v2251, %v2249
    %v2360 = vpack.c.b16 %v2254, %v2252
    %v2361 = vpack.c.b16 %v2255, %v2253
    %v2362 = vpack.c.b16 %v2258, %v2256
    %v2363 = vpack.c.b16 %v2259, %v2257
    %v2364 = vpack.c.b16 %v2262, %v2260
    %v2365 = vpack.c.b16 %v2263, %v2261
    %v2366 = vpack.c.b16 %v2266, %v2264
    %v2367 = vpack.c.b16 %v2267, %v2265
    %v2368 = vpack.c.b16 %v2270, %v2268
    %v2369 = vpack.c.b16 %v2271, %v2269
    %v2370 = vpack.c.b16 %v2274, %v2272
    %v2371 = vpack.c.b16 %v2275, %v2273
    %v2372 = vpack.c.b16 %v2278, %v2276
    %v2373 = vpack.c.b16 %v2279, %v2277
    %v2374 = vpack.c.b16 %v2282, %v2280
    %v2375 = vpack.c.b16 %v2283, %v2281
    %v2376 = vpack.c.b16 %v2286, %v2284
    %v2377 = vpack.c.b16 %v2287, %v2285
    %v2378 = vpack.c.b16 %v2290, %v2288
    %v2379 = vpack.c.b16 %v2291, %v2289
    %v2380 = vpack.c.b16 %v2294, %v2292
    %v2381 = vpack.c.b16 %v2295, %v2293
    %v2382 = vpack.c.b16 %v2298, %v2296
    %v2383 = vpack.c.b16 %v2299, %v2297
    %v2384 = vpack.c.b16 %v2302, %v2300
    %v2385 = vpack.c.b16 %v2303, %v2301
    %v2386 = vpack.c.b16 %v2306, %v2304
    %v2387 = vpack.c.b16 %v2307, %v2305
    %v2388 = vpack.c.b16 %v2310, %v2308
    %v2389 = vpack.c.b16 %v2311, %v2309
    %v2390 = vpack.c.b16 %v2314, %v2312
    %v2391 = vpack.c.b16 %v2315, %v2313
    %v2392 = vpack.c.b16 %v2318, %v2316
    %v2393 = vpack.c.b16 %v2319, %v2317
    %v2394 = vpack.c.b16 %v2322, %v2320
    %v2395 = vpack.c.b16 %v2323, %v2321
    %v2396 = vpack.c.b16 %v2326, %v2324
    %v2397 = vpack.c.b16 %v2327, %v2325
    %v2398 = vpack.c.b16 %v2330, %v2328
    %v2399 = vpack.c.b16 %v2331, %v2329
    %v2400 = vpack.c.b16 %v2334, %v2332
    %v2401 = vpack.c.b16 %v2335, %v2333
    %v2402 = vpack.c.b16 %v2338, %v2336
    %v2403 = vpack.c.b16 %v2339, %v2337
    %2468 = vmatprep.subr.bf16.mxu0 %v2341
    %2469 = vmatpush1.bf16.msra.mxu0 %v2340
    %2470 = vmatprep.subr.bf16.mxu0 %v2343
    %2471 = vmatpush1.bf16.msra.mxu0 %v2342
    %2472 = vmatprep.subr.bf16.mxu0 %v2345
    %2473 = vmatpush1.bf16.msra.mxu0 %v2344
    %2474 = vmatprep.subr.bf16.mxu0 %v2347
    %2475 = vmatpush1.bf16.msra.mxu0 %v2346
    %2476 = vmatprep.subr.bf16.mxu0 %v2349
    %2477 = vmatpush1.bf16.msra.mxu0 %v2348
    %2478 = vmatprep.subr.bf16.mxu0 %v2351
    %2479 = vmatpush1.bf16.msra.mxu0 %v2350
    %2480 = vmatprep.subr.bf16.mxu0 %v2353
    %2481 = vmatpush1.bf16.msra.mxu0 %v2352
    %2482 = vmatprep.subr.bf16.mxu0 %v2355
    %2483 = vmatpush1.bf16.msra.mxu0 %v2354
    %2484 = vmatprep.subr.bf16.mxu0 %v2357
    %2485 = vmatpush1.bf16.msra.mxu0 %v2356
    %2486 = vmatprep.subr.bf16.mxu0 %v2359
    %2487 = vmatpush1.bf16.msra.mxu0 %v2358
    %2488 = vmatprep.subr.bf16.mxu0 %v2361
    %2489 = vmatpush1.bf16.msra.mxu0 %v2360
    %2490 = vmatprep.subr.bf16.mxu0 %v2363
    %2491 = vmatpush1.bf16.msra.mxu0 %v2362
    %2492 = vmatprep.subr.bf16.mxu0 %v2365
    %2493 = vmatpush1.bf16.msra.mxu0 %v2364
    %2494 = vmatprep.subr.bf16.mxu0 %v2367
    %2495 = vmatpush1.bf16.msra.mxu0 %v2366
    %2496 = vmatprep.subr.bf16.mxu0 %v2369
    %2497 = vmatpush1.bf16.msra.mxu0 %v2368
    %2498 = vmatprep.subr.bf16.mxu0 %v2371
    %2499 = vmatpush1.bf16.msra.mxu0 %v2370
    %2500 = vmatprep.mubr.bf16.mxu0 %v2069
    %2501 = vmatmul.mubr.bf16.gmra.mrb[0].mxu0 %v2068
    %v2502 = vpop.f32.mrb[0].mxu0
    %v2503 = vadd.f32 %v2141, %v2502
    %v2504 = vpop.f32.mrb[0].mxu0
    %v2505 = vadd.f32 %v2145, %v2504
    %v2506 = vpop.f32.mrb[0].mxu0
    %v2507 = vpop.f32.mrb[0].mxu0
    %2508 = vdwg.mxu0
    %2509 = vmatprep.subr.bf16.mxu0 %v2373
    %2510 = vmatpush1.bf16.msra.mxu0 %v2372
    %2511 = vmatprep.subr.bf16.mxu0 %v2375
    %2512 = vmatpush1.bf16.msra.mxu0 %v2374
    %2513 = vmatprep.subr.bf16.mxu0 %v2377
    %2514 = vmatpush1.bf16.msra.mxu0 %v2376
    %2515 = vmatprep.subr.bf16.mxu0 %v2379
    %2516 = vmatpush1.bf16.msra.mxu0 %v2378
    %2517 = vmatprep.subr.bf16.mxu0 %v2381
    %2518 = vmatpush1.bf16.msra.mxu0 %v2380
    %2519 = vmatprep.subr.bf16.mxu0 %v2383
    %2520 = vmatpush1.bf16.msra.mxu0 %v2382
    %2521 = vmatprep.subr.bf16.mxu0 %v2385
    %2522 = vmatpush1.bf16.msra.mxu0 %v2384
    %2523 = vmatprep.subr.bf16.mxu0 %v2387
    %2524 = vmatpush1.bf16.msra.mxu0 %v2386
    %2525 = vmatprep.subr.bf16.mxu0 %v2389
    %2526 = vmatpush1.bf16.msra.mxu0 %v2388
    %2527 = vmatprep.subr.bf16.mxu0 %v2391
    %2528 = vmatpush1.bf16.msra.mxu0 %v2390
    %2529 = vmatprep.subr.bf16.mxu0 %v2393
    %2530 = vmatpush1.bf16.msra.mxu0 %v2392
    %2531 = vmatprep.subr.bf16.mxu0 %v2395
    %2532 = vmatpush1.bf16.msra.mxu0 %v2394
    %2533 = vmatprep.subr.bf16.mxu0 %v2397
    %2534 = vmatpush1.bf16.msra.mxu0 %v2396
    %2535 = vmatprep.subr.bf16.mxu0 %v2399
    %2536 = vmatpush1.bf16.msra.mxu0 %v2398
    %2537 = vmatprep.subr.bf16.mxu0 %v2401
    %2538 = vmatpush1.bf16.msra.mxu0 %v2400
    %2539 = vmatprep.subr.bf16.mxu0 %v2403
    %2540 = vmatpush1.bf16.msra.mxu0 %v2402
    %2541 = vmatprep.mubr.bf16.mxu0 %v2071
    %2542 = vmatmul.mubr.bf16.gmra.mrb[0].mxu0 %v2070
    %v2543 = vpop.f32.mrb[0].mxu0
    %v2544 = vadd.f32 %v2503, %v2543
    %v2545 = vpop.f32.mrb[0].mxu0
    %v2546 = vadd.f32 %v2505, %v2545
    %v2547 = vpop.f32.mrb[0].mxu0
    %v2548 = vpop.f32.mrb[0].mxu0
    %2549 = vdwg.mxu0
    %v2550 = vmul.f32 %v2544, 0.2
    %v2551 = vmul.f32 %v2546, 0.2
    %v2552 = vmax.f32 %v2544, %v2550
    %v2553 = vmax.f32 %v2546, %v2551
    %v2554 = vld [vmem:[%s5] sm:$0x3]
    %v2556 = vlaneseq
    %v2557 = vshrl.u32 %v2556, 7
    %v2558 = vsub.s32 0, %v2557
    %v2559 = vrot.slane %v2554, %v2558
    %v2560 = vlaneseq
    %v2561 = vshrl.u32 %v2560, 7
    %v2562 = vsub.s32 1, %v2561
    %v2563 = vrot.slane %v2554, %v2562
    %v2566 = vmul.f32 %v2552, %v2559
    %v2567 = vmul.f32 %v2553, %v2563
    %v2568 = vadd.f32 %v2566, %v2567
    %2569 = vadd.xlane.f32.xlu0 %v2568
    %v2570 = vpop.xlane.xlu0 %2569
    %v2571 = vld [vmem:[#allocation2] sm:$0x1]
    %v2573 = vlaneseq
    %v2574 = vshrl.u32 %v2573, 7
    %v2575 = vsub.s32 0, %v2574
    %v2576 = vrot.slane %v2571, %v2575
    %v2578 = vadd.f32 %v2570, %v2576
    %v2579 = vxor.u32 %v2578, 2147483648
    %v2580 = vmul.f32 %v2579, 1.442695
    %v2581 = vpow.pop %v2580
    %v2582 = vadd.f32 %v2581, 1.0
    %v2583 = vrcp.pop %v2582
    %v2584 = vmul.f32 1.0, %v2583
    %2585 = vxpose.xlu0.b32.start [1/16] %v2584, 128
    %2586 = vxpose.xlu0.b32.cont [2/16] 0.0, 128
    %2587 = vxpose.xlu0.b32.cont [3/16] 0.0, 128
    %2588 = vxpose.xlu0.b32.cont [4/16] 0.0, 128
    %2589 = vxpose.xlu0.b32.cont [5/16] 0.0, 128
    %2590 = vxpose.xlu0.b32.cont [6/16] 0.0, 128
    %2591 = vxpose.xlu0.b32.cont [7/16] 0.0, 128
    %2592 = vxpose.xlu0.b32.cont [8/16] 0.0, 128
    %2593 = vxpose.xlu0.b32.cont [9/16] 0.0, 128
    %2594 = vxpose.xlu0.b32.cont [10/16] 0.0, 128
    %2595 = vxpose.xlu0.b32.cont [11/16] 0.0, 128
    %2596 = vxpose.xlu0.b32.cont [12/16] 0.0, 128
    %2597 = vxpose.xlu0.b32.cont [13/16] 0.0, 128
    %2598 = vxpose.xlu0.b32.cont [14/16] 0.0, 128
    %2599 = vxpose.xlu0.b32.cont [15/16] 0.0, 128
    %2600 = vxpose.xlu0.b32.end [16/16] 0.0, 128
    %v2601 = vpop.trf.xlu0
    %v2602 = vpop.trf.xlu0
    %v2603 = vpop.trf.xlu0
    %v2604 = vpop.trf.xlu0
    %v2605 = vpop.trf.xlu0
    %v2606 = vpop.trf.xlu0
    %v2607 = vpop.trf.xlu0
    %v2608 = vpop.trf.xlu0
    %v2609 = vpop.trf.xlu0
    %v2610 = vpop.trf.xlu0
    %v2611 = vpop.trf.xlu0
    %v2612 = vpop.trf.xlu0
    %v2613 = vpop.trf.xlu0
    %v2614 = vpop.trf.xlu0
    %v2615 = vpop.trf.xlu0
    %v2616 = vpop.trf.xlu0
    %vm2617 = vcmask 57344
    %2618 = vst.msk [vmem:[#allocation9] sm:$0x1] %vm2617, %v2601
    // Predicated region
    $region42: #{tpu_custom_call.1} parent=1 // pred_check
      _
    $region43: #{tpu_custom_call.1} parent=1 // pred_check_branch
      %2620 = sbr.rel (0) target = $region45
    $region44: #{tpu_custom_call.1} parent=1 // pred_region
      %s2622 = ssub.s32 16, 16
      %2623 = vsyncadd [#allocation5], %s2622
      %s2625 = sshll.u32 [#allocation9], 4
      %s2626 = int_to_ptr.vmem [resolvable:$true] %s2625
      %2628 = dma.vmem_to_hbm [thread:$0]  %s2626, 16, %s7, [#allocation5]
    $region45: #{tpu_custom_call.1} parent=1 // pred_fallthru
      _
    // Predicated region
    $region46: #{tpu_custom_call.1} parent=1 // pred_check
      _
    $region47: #{tpu_custom_call.1} parent=1 // pred_check_branch
      %2630 = sbr.rel (0) target = $region49
    $region48: #{tpu_custom_call.1} parent=1 // pred_region
      %2631 = dma.done [#allocation5], 16
    $region49: #{tpu_custom_call.1} parent=1 // pred_fallthru
      _
    %2632 = vsyncpa [#allocation4], 1
    %2633 = vsyncpa [#allocation7], 1
    %2634 = vsyncpa [#allocation5], 1

</llo_original>
